<compile_context>
chip_gen: v5e
topology: v5e:2x2
jax: 0.10.0
libtpu: 0.0.40
codegen_flags: <defaults>
</compile_context>

<pallas_src>
import functools
import math

import jax
import jax.numpy as jnp
import numpy as np
from jax.experimental import pallas as pl
from jax.experimental.pallas import tpu as pltpu


# -----------------------------------------------------------------------------
# Pallas kernel: one batch element of MultiHeadAttention + residual + LayerNorm
# -----------------------------------------------------------------------------

def _mha_kernel(xq_ref, xk_ref, xv_ref, mask_ref,
                wq_ref, wk_ref, wv_ref, wfc_ref, g_ref, b_ref,
                out_ref, *attn_refs,
                n_heads, d_k, d_v, eps, mxu_dtype):
    f32 = jnp.float32
    xq = xq_ref[0]            # (Lq, D)  residual kept in f32
    xk = xk_ref[0]            # (Lk, D)
    xv = xv_ref[0]            # (Lk, D)
    mask = mask_ref[0]        # (Lq, Lk) float32, > 0 means "masked"

    Lq, Lk = xq.shape[0], xk.shape[0]
    H, dk, dv = n_heads, d_k, d_v

    def cast(a):
        return a.astype(mxu_dtype)

    # Full-width QKV projections (one MXU matmul each).  W_Q is pre-scaled by
    # 1/sqrt(d_k) at parameter construction, so no per-step score scaling.
    q = jnp.dot(cast(xq), cast(wq_ref[...]), preferred_element_type=f32)  # (Lq, H*dk)
    k = jnp.dot(cast(xk), cast(wk_ref[...]), preferred_element_type=f32)  # (Lk, H*dk)
    v = jnp.dot(cast(xv), cast(wv_ref[...]), preferred_element_type=f32)  # (Lk, H*dv)

    # Head-major layout (H, L, d) — mirrors PyTorch .view().transpose(1, 2).
    qh = jnp.transpose(q.reshape(Lq, H, dk), (1, 0, 2))
    kh = jnp.transpose(k.reshape(Lk, H, dk), (1, 0, 2))
    vh = jnp.transpose(v.reshape(Lk, H, dv), (1, 0, 2))

    # Batched scores for all heads in one contraction; no explicit K.T.
    scores = jnp.einsum('hqd,hkd->hqk', qh, kh, preferred_element_type=f32)
    scores = jnp.where(mask[None, :, :] > 0.0, f32(-1e9), scores)

    # Softmax in f32; divide moved to the EUP via approximate reciprocal.
    m = jnp.max(scores, axis=-1, keepdims=True)
    e = jnp.exp(scores - m)
    attn = e * pl.reciprocal(jnp.sum(e, axis=-1, keepdims=True), approx=True)

    # Batched context, then a single (Lq, H*dv) @ (H*dv, D) output projection.
    ctx = jnp.einsum('hqk,hkd->hqd', cast(attn), cast(vh),
                     preferred_element_type=f32)                         # (H, Lq, dv)
    ctx = jnp.transpose(ctx, (1, 0, 2)).reshape(Lq, H * dv)              # (Lq, H*dv)
    o = jnp.dot(cast(ctx), cast(wfc_ref[...]), preferred_element_type=f32)
    o = o + xq.astype(f32)                                               # residual

    # LayerNorm over d_model (f32 statistics, rsqrt on the EUP).
    mu = jnp.mean(o, axis=-1, keepdims=True)
    var = jnp.mean(jnp.square(o - mu), axis=-1, keepdims=True)
    y = (o - mu) * jax.lax.rsqrt(var + eps)
    out_ref[0] = (y * g_ref[0] + b_ref[0]).astype(out_ref.dtype)

    if attn_refs:  # optional output; one lane-dense (Lq, H*Lk) store
        attn_refs[0][0] = jnp.transpose(attn, (1, 0, 2)).reshape(Lq, H * Lk)


# -----------------------------------------------------------------------------
# Wrapper
# -----------------------------------------------------------------------------

def multi_head_attention(input_q, input_k, input_v, attn_mask, params, *,
                         n_heads, d_k, d_v, eps=1e-5,
                         need_attn=True, mxu_dtype=jnp.float32):
    """Fused MHA forward. attn_mask: bool/float (B, Lq, Lk), truthy => masked.

    Expects params['wq'] pre-scaled by 1/sqrt(d_k) (done in init_mha_params).
    Returns (output (B, Lq, D), attn (B, H, Lq, Lk) or None).
    """
    B, Lq, D = input_q.shape
    Lk = input_k.shape[1]
    mask = attn_mask.astype(jnp.float32)

    kernel = functools.partial(_mha_kernel, n_heads=n_heads, d_k=d_k, d_v=d_v,
                               eps=eps, mxu_dtype=mxu_dtype)

    out_struct = jax.ShapeDtypeStruct((B, Lq, D), jnp.float32)
    out_spec = pl.BlockSpec((1, Lq, D), lambda b: (b, 0, 0))
    if need_attn:
        out_shape = (out_struct,
                     jax.ShapeDtypeStruct((B, Lq, n_heads * Lk), jnp.float32))
        out_specs = (out_spec,
                     pl.BlockSpec((1, Lq, n_heads * Lk), lambda b: (b, 0, 0)))
    else:
        out_shape = out_struct
        out_specs = out_spec

    results = pl.pallas_call(
        kernel,
        out_shape=out_shape,
        grid=(B,),
        in_specs=[
            pl.BlockSpec((1, Lq, D), lambda b: (b, 0, 0)),
            pl.BlockSpec((1, Lk, D), lambda b: (b, 0, 0)),
            pl.BlockSpec((1, Lk, D), lambda b: (b, 0, 0)),
            pl.BlockSpec((1, Lq, Lk), lambda b: (b, 0, 0)),
            pl.BlockSpec((D, n_heads * d_k), lambda b: (0, 0)),
            pl.BlockSpec((D, n_heads * d_k), lambda b: (0, 0)),
            pl.BlockSpec((D, n_heads * d_v), lambda b: (0, 0)),
            pl.BlockSpec((n_heads * d_v, D), lambda b: (0, 0)),
            pl.BlockSpec((1, D), lambda b: (0, 0)),
            pl.BlockSpec((1, D), lambda b: (0, 0)),
        ],
        out_specs=out_specs,
        compiler_params=pltpu.CompilerParams(dimension_semantics=("parallel",)),
    )(input_q, input_k, input_v, mask,
      params['wq'], params['wk'], params['wv'], params['wfc'],
      params['ln_g'], params['ln_b'])

    if need_attn:
        out, attn_dense = results
        attn = jnp.transpose(attn_dense.reshape(B, Lq, n_heads, Lk), (0, 2, 1, 3))
        return out, attn
    return results, None


# -----------------------------------------------------------------------------
# Parameters (deterministic) and a pure-JAX reference for self-checking
# -----------------------------------------------------------------------------

def init_mha_params(key, d_model, n_heads, d_k, d_v):
    ks = jax.random.split(key, 4)

    def lin(k, fan_in, fan_out):
        return jax.random.normal(k, (fan_in, fan_out), jnp.float32) / math.sqrt(fan_in)

    return {
        # 1/sqrt(d_k) attention scale folded into W_Q once (static transform).
        'wq': lin(ks[0], d_model, n_heads * d_k) * (1.0 / math.sqrt(d_k)),
        'wk': lin(ks[1], d_model, n_heads * d_k),
        'wv': lin(ks[2], d_model, n_heads * d_v),
        'wfc': lin(ks[3], n_heads * d_v, d_model),
        'ln_g': jnp.ones((1, d_model), jnp.float32),
        'ln_b': jnp.zeros((1, d_model), jnp.float32),
    }


def mha_reference(input_q, input_k, input_v, attn_mask, p, *,
                  n_heads, d_k, d_v, eps=1e-5):
    """Pure-JAX mirror of the PyTorch module (wq already carries 1/sqrt(d_k))."""
    B, Lq, _ = input_q.shape
    Lk = input_k.shape[1]
    Q = jnp.transpose((input_q @ p['wq']).reshape(B, Lq, n_heads, d_k), (0, 2, 1, 3))
    K = jnp.transpose((input_k @ p['wk']).reshape(B, Lk, n_heads, d_k), (0, 2, 1, 3))
    V = jnp.transpose((input_v @ p['wv']).reshape(B, Lk, n_heads, d_v), (0, 2, 1, 3))
    scores = jnp.einsum('bhqd,bhkd->bhqk', Q, K)
    scores = jnp.where(attn_mask[:, None, :, :], jnp.float32(-1e9), scores)
    attn = jax.nn.softmax(scores, axis=-1)
    ctx = jnp.einsum('bhqk,bhkd->bhqd', attn, V)
    ctx = jnp.transpose(ctx, (0, 2, 1, 3)).reshape(B, Lq, n_heads * d_v)
    o = ctx @ p['wfc'] + input_q
    mu = o.mean(-1, keepdims=True)
    var = jnp.square(o - mu).mean(-1, keepdims=True)
    y = (o - mu) * jax.lax.rsqrt(var + eps)
    return y * p['ln_g'] + p['ln_b'], attn


# -----------------------------------------------------------------------------
# Main
# -----------------------------------------------------------------------------

if __name__ == "__main__":
    B, Lq, Lk = 2, 8, 8
    d_model, n_heads, d_k, d_v = 32, 4, 8, 8

    key = jax.random.PRNGKey(0)
    kp, kq, kk, kv = jax.random.split(key, 4)
    params = init_mha_params(kp, d_model, n_heads, d_k, d_v)

    input_q = jax.random.normal(kq, (B, Lq, d_model), jnp.float32)
    input_k = jax.random.normal(kk, (B, Lk, d_model), jnp.float32)
    input_v = jax.random.normal(kv, (B, Lk, d_model), jnp.float32)

    # Mask: causal upper triangle + padding on the last key position (True => masked)
    causal = jnp.triu(jnp.ones((Lq, Lk), jnp.bool_), k=1)
    pad = jnp.zeros((B, 1, Lk), jnp.bool_).at[:, :, -1].set(True)
    attn_mask = jnp.broadcast_to(causal[None], (B, Lq, Lk)) | pad

    fwd = jax.jit(functools.partial(multi_head_attention,
                                    n_heads=n_heads, d_k=d_k, d_v=d_v))
    out, attn = fwd(input_q, input_k, input_v, attn_mask, params)
    jax.block_until_ready((out, attn))

    assert out.shape == (B, Lq, d_model)
    assert attn.shape == (B, n_heads, Lq, Lk)

    ref_out, ref_attn = mha_reference(input_q, input_k, input_v, attn_mask, params,
                                      n_heads=n_heads, d_k=d_k, d_v=d_v)
    np.testing.assert_allclose(np.asarray(out), np.asarray(ref_out),
                               rtol=2e-2, atol=2e-3)
    np.testing.assert_allclose(np.asarray(attn), np.asarray(ref_attn),
                               rtol=2e-2, atol=2e-3)

    print("KERNEL_OK")
</pallas_src>

<mosaic_0001>
module attributes {stable_mosaic.version = 11 : i64} {
  func.func @_mha_kernel(%arg0: i32, %arg1: memref<1x8x32xf32, #tpu.memory_space<vmem>>, %arg2: memref<1x8x32xf32, #tpu.memory_space<vmem>>, %arg3: memref<1x8x32xf32, #tpu.memory_space<vmem>>, %arg4: memref<1x8x8xf32, #tpu.memory_space<vmem>>, %arg5: memref<32x32xf32, #tpu.memory_space<vmem>>, %arg6: memref<32x32xf32, #tpu.memory_space<vmem>>, %arg7: memref<32x32xf32, #tpu.memory_space<vmem>>, %arg8: memref<32x32xf32, #tpu.memory_space<vmem>>, %arg9: memref<1x32xf32, #tpu.memory_space<vmem>>, %arg10: memref<1x32xf32, #tpu.memory_space<vmem>>, %arg11: memref<1x8x32xf32, #tpu.memory_space<vmem>>, %arg12: memref<1x8x32xf32, #tpu.memory_space<vmem>>) attributes {dimension_semantics = [#tpu.dimension_semantics<parallel>], iteration_bounds = array<i64: 2>, scalar_prefetch = 0 : i64, scratch_operands = 0 : i64, tpu.core_type = #tpu.core_type<tc>, window_params = [{transform_indices = @transform_0, window_bounds = array<i64: 1, 8, 32>}, {transform_indices = @transform_1, window_bounds = array<i64: 1, 8, 32>}, {transform_indices = @transform_2, window_bounds = array<i64: 1, 8, 32>}, {transform_indices = @transform_3, window_bounds = array<i64: 1, 8, 8>}, {pipeline_mode = #tpu.pipeline_mode<synchronous>, transform_indices = @transform_4, window_bounds = array<i64: 32, 32>}, {pipeline_mode = #tpu.pipeline_mode<synchronous>, transform_indices = @transform_5, window_bounds = array<i64: 32, 32>}, {pipeline_mode = #tpu.pipeline_mode<synchronous>, transform_indices = @transform_6, window_bounds = array<i64: 32, 32>}, {pipeline_mode = #tpu.pipeline_mode<synchronous>, transform_indices = @transform_7, window_bounds = array<i64: 32, 32>}, {pipeline_mode = #tpu.pipeline_mode<synchronous>, transform_indices = @transform_8, window_bounds = array<i64: 1, 32>}, {pipeline_mode = #tpu.pipeline_mode<synchronous>, transform_indices = @transform_9, window_bounds = array<i64: 1, 32>}, {transform_indices = @transform_10, window_bounds = array<i64: 1, 8, 32>}, {transform_indices = @transform_11, window_bounds = array<i64: 1, 8, 32>}]} {
    %c0 = arith.constant 0 : index
    %c0_0 = arith.constant 0 : index
    %c0_1 = arith.constant 0 : index
    %0 = vector.load %arg1[%c0, %c0_0, %c0_1] : memref<1x8x32xf32, #tpu.memory_space<vmem>>, vector<1x8x32xf32>
    %1 = vector.shape_cast %0 : vector<1x8x32xf32> to vector<8x32xf32>
    %c0_2 = arith.constant 0 : index
    %c0_3 = arith.constant 0 : index
    %c0_4 = arith.constant 0 : index
    %2 = vector.load %arg2[%c0_2, %c0_3, %c0_4] : memref<1x8x32xf32, #tpu.memory_space<vmem>>, vector<1x8x32xf32>
    %3 = vector.shape_cast %2 : vector<1x8x32xf32> to vector<8x32xf32>
    %c0_5 = arith.constant 0 : index
    %c0_6 = arith.constant 0 : index
    %c0_7 = arith.constant 0 : index
    %4 = vector.load %arg3[%c0_5, %c0_6, %c0_7] : memref<1x8x32xf32, #tpu.memory_space<vmem>>, vector<1x8x32xf32>
    %5 = vector.shape_cast %4 : vector<1x8x32xf32> to vector<8x32xf32>
    %c0_8 = arith.constant 0 : index
    %c0_9 = arith.constant 0 : index
    %c0_10 = arith.constant 0 : index
    %6 = vector.load %arg4[%c0_8, %c0_9, %c0_10] : memref<1x8x8xf32, #tpu.memory_space<vmem>>, vector<1x8x8xf32>
    %7 = vector.shape_cast %6 : vector<1x8x8xf32> to vector<8x8xf32>
    %c0_11 = arith.constant 0 : index
    %c0_12 = arith.constant 0 : index
    %8 = vector.load %arg5[%c0_11, %c0_12] : memref<32x32xf32, #tpu.memory_space<vmem>>, vector<32x32xf32>
    %cst = arith.constant dense<0.000000e+00> : vector<8x32xf32>
    %9 = tpu.matmul %1, %8, %cst {dimension_numbers = #tpu.dot_dimension_numbers<[1], [0], [0], [1], [0, 0, 1, 1], [], []>} : vector<8x32xf32>, vector<32x32xf32>, vector<8x32xf32> -> vector<8x32xf32>
    %c0_13 = arith.constant 0 : index
    %c0_14 = arith.constant 0 : index
    %10 = vector.load %arg6[%c0_13, %c0_14] : memref<32x32xf32, #tpu.memory_space<vmem>>, vector<32x32xf32>
    %cst_15 = arith.constant dense<0.000000e+00> : vector<8x32xf32>
    %11 = tpu.matmul %3, %10, %cst_15 {dimension_numbers = #tpu.dot_dimension_numbers<[1], [0], [0], [1], [0, 0, 1, 1], [], []>} : vector<8x32xf32>, vector<32x32xf32>, vector<8x32xf32> -> vector<8x32xf32>
    %c0_16 = arith.constant 0 : index
    %c0_17 = arith.constant 0 : index
    %12 = vector.load %arg7[%c0_16, %c0_17] : memref<32x32xf32, #tpu.memory_space<vmem>>, vector<32x32xf32>
    %cst_18 = arith.constant dense<0.000000e+00> : vector<8x32xf32>
    %13 = tpu.matmul %5, %12, %cst_18 {dimension_numbers = #tpu.dot_dimension_numbers<[1], [0], [0], [1], [0, 0, 1, 1], [], []>} : vector<8x32xf32>, vector<32x32xf32>, vector<8x32xf32> -> vector<8x32xf32>
    %14 = vector.shape_cast %9 : vector<8x32xf32> to vector<8x4x8xf32>
    %15 = tpu.transpose %14, [1, 0, 2] : vector<8x4x8xf32> -> vector<4x8x8xf32>
    %16 = vector.shape_cast %11 : vector<8x32xf32> to vector<8x4x8xf32>
    %17 = tpu.transpose %16, [1, 0, 2] : vector<8x4x8xf32> -> vector<4x8x8xf32>
    %18 = vector.shape_cast %13 : vector<8x32xf32> to vector<8x4x8xf32>
    %19 = tpu.transpose %18, [1, 0, 2] : vector<8x4x8xf32> -> vector<4x8x8xf32>
    "tpu.trace_start"() <{level = 10 : i32, message = "hqd,hkd->hqk"}> : () -> ()
    %cst_19 = arith.constant dense<0.000000e+00> : vector<4x8x8xf32>
    %20 = tpu.matmul %15, %17, %cst_19 {dimension_numbers = #tpu.dot_dimension_numbers<[2], [2], [1], [1], [0, 0, 0, 1, 1, 1], [0], [0]>} : vector<4x8x8xf32>, vector<4x8x8xf32>, vector<4x8x8xf32> -> vector<4x8x8xf32>
    "tpu.trace_stop"() : () -> ()
    %21 = vector.shape_cast %7 : vector<8x8xf32> to vector<1x8x8xf32>
    %cst_20 = arith.constant 0.000000e+00 : f32
    %22 = vector.broadcast %cst_20 : f32 to vector<1x8x8xf32>
    %23 = arith.cmpf ogt, %21, %22 : vector<1x8x8xf32>
    %cst_21 = arith.constant -1.000000e+09 : f32
    %24 = vector.shape_cast %23 : vector<1x8x8xi1> to vector<1x8x8xi1>
    %25 = vector.broadcast %24 : vector<1x8x8xi1> to vector<4x8x8xi1>
    %26 = vector.broadcast %cst_21 : f32 to vector<4x8x8xf32>
    %27 = arith.select %25, %26, %20 : vector<4x8x8xi1>, vector<4x8x8xf32>
    %cst_22 = arith.constant dense<0xFF800000> : vector<4x8xf32>
    %28 = vector.multi_reduction <maximumf>, %27, %cst_22 [2] : vector<4x8x8xf32> to vector<4x8xf32>
    %29 = vector.shape_cast %28 : vector<4x8xf32> to vector<4x8x1xf32>
    %30 = vector.broadcast %29 : vector<4x8x1xf32> to vector<4x8x8xf32>
    %31 = arith.subf %27, %30 : vector<4x8x8xf32>
    %32 = math.exp %31 : vector<4x8x8xf32>
    %cst_23 = arith.constant dense<0.000000e+00> : vector<4x8xf32>
    %33 = vector.multi_reduction <add>, %32, %cst_23 [2] : vector<4x8x8xf32> to vector<4x8xf32>
    %34 = vector.shape_cast %33 : vector<4x8xf32> to vector<4x8x1xf32>
    %35 = tpu.reciprocal %34 {approx = true} : vector<4x8x1xf32> -> vector<4x8x1xf32>
    %36 = vector.broadcast %35 : vector<4x8x1xf32> to vector<4x8x8xf32>
    %37 = arith.mulf %32, %36 : vector<4x8x8xf32>
    "tpu.trace_start"() <{level = 10 : i32, message = "hqk,hkd->hqd"}> : () -> ()
    %cst_24 = arith.constant dense<0.000000e+00> : vector<4x8x8xf32>
    %38 = tpu.matmul %37, %19, %cst_24 {dimension_numbers = #tpu.dot_dimension_numbers<[2], [1], [1], [2], [0, 0, 0, 1, 1, 2], [0], [0]>} : vector<4x8x8xf32>, vector<4x8x8xf32>, vector<4x8x8xf32> -> vector<4x8x8xf32>
    "tpu.trace_stop"() : () -> ()
    %39 = tpu.transpose %38, [1, 0, 2] : vector<4x8x8xf32> -> vector<8x4x8xf32>
    %40 = vector.shape_cast %39 : vector<8x4x8xf32> to vector<8x32xf32>
    %c0_25 = arith.constant 0 : index
    %c0_26 = arith.constant 0 : index
    %41 = vector.load %arg8[%c0_25, %c0_26] : memref<32x32xf32, #tpu.memory_space<vmem>>, vector<32x32xf32>
    %cst_27 = arith.constant dense<0.000000e+00> : vector<8x32xf32>
    %42 = tpu.matmul %40, %41, %cst_27 {dimension_numbers = #tpu.dot_dimension_numbers<[1], [0], [0], [1], [0, 0, 1, 1], [], []>} : vector<8x32xf32>, vector<32x32xf32>, vector<8x32xf32> -> vector<8x32xf32>
    %43 = arith.addf %42, %1 : vector<8x32xf32>
    %cst_28 = arith.constant dense<0.000000e+00> : vector<8xf32>
    %44 = vector.multi_reduction <add>, %43, %cst_28 [1] : vector<8x32xf32> to vector<8xf32>
    %45 = vector.shape_cast %44 : vector<8xf32> to vector<8x1xf32>
    %cst_29 = arith.constant 3.200000e+01 : f32
    %46 = vector.broadcast %cst_29 : f32 to vector<8x1xf32>
    %47 = arith.divf %45, %46 : vector<8x1xf32>
    %48 = vector.broadcast %47 : vector<8x1xf32> to vector<8x32xf32>
    %49 = arith.subf %43, %48 : vector<8x32xf32>
    %50 = arith.mulf %49, %49 : vector<8x32xf32>
    %cst_30 = arith.constant dense<0.000000e+00> : vector<8xf32>
    %51 = vector.multi_reduction <add>, %50, %cst_30 [1] : vector<8x32xf32> to vector<8xf32>
    %52 = vector.shape_cast %51 : vector<8xf32> to vector<8x1xf32>
    %cst_31 = arith.constant 3.200000e+01 : f32
    %53 = vector.broadcast %cst_31 : f32 to vector<8x1xf32>
    %54 = arith.divf %52, %53 : vector<8x1xf32>
    %55 = vector.broadcast %47 : vector<8x1xf32> to vector<8x32xf32>
    %56 = arith.subf %43, %55 : vector<8x32xf32>
    %cst_32 = arith.constant 9.99999974E-6 : f32
    %57 = vector.broadcast %cst_32 : f32 to vector<8x1xf32>
    %58 = arith.addf %54, %57 : vector<8x1xf32>
    %59 = math.rsqrt %58 : vector<8x1xf32>
    %60 = vector.broadcast %59 : vector<8x1xf32> to vector<8x32xf32>
    %61 = arith.mulf %56, %60 : vector<8x32xf32>
    %c0_33 = arith.constant 0 : index
    %c0_34 = arith.constant 0 : index
    %62 = vector.load %arg9[%c0_33, %c0_34] : memref<1x32xf32, #tpu.memory_space<vmem>>, vector<1x32xf32>
    %63 = vector.shape_cast %62 : vector<1x32xf32> to vector<32xf32>
    %64 = vector.shape_cast %63 : vector<32xf32> to vector<1x32xf32>
    %65 = vector.broadcast %64 : vector<1x32xf32> to vector<8x32xf32>
    %66 = arith.mulf %61, %65 : vector<8x32xf32>
    %c0_35 = arith.constant 0 : index
    %c0_36 = arith.constant 0 : index
    %67 = vector.load %arg10[%c0_35, %c0_36] : memref<1x32xf32, #tpu.memory_space<vmem>>, vector<1x32xf32>
    %68 = vector.shape_cast %67 : vector<1x32xf32> to vector<32xf32>
    %69 = vector.shape_cast %68 : vector<32xf32> to vector<1x32xf32>
    %70 = vector.broadcast %69 : vector<1x32xf32> to vector<8x32xf32>
    %71 = arith.addf %66, %70 : vector<8x32xf32>
    %c0_37 = arith.constant 0 : index
    %c0_38 = arith.constant 0 : index
    %c0_39 = arith.constant 0 : index
    %72 = vector.load %arg11[%c0_37, %c0_38, %c0_39] : memref<1x8x32xf32, #tpu.memory_space<vmem>>, vector<1x8x32xf32>
    %73 = vector.shape_cast %72 : vector<1x8x32xf32> to vector<8x32xf32>
    %74 = vector.shape_cast %71 : vector<8x32xf32> to vector<1x8x32xf32>
    tpu.vector_store %arg11[%c0_37, %c0_38, %c0_39], %74 {strides = array<i32>} : memref<1x8x32xf32, #tpu.memory_space<vmem>>, vector<1x8x32xf32>,
    %75 = tpu.transpose %37, [1, 0, 2] : vector<4x8x8xf32> -> vector<8x4x8xf32>
    %76 = vector.shape_cast %75 : vector<8x4x8xf32> to vector<8x32xf32>
    %c0_40 = arith.constant 0 : index
    %c0_41 = arith.constant 0 : index
    %c0_42 = arith.constant 0 : index
    %77 = vector.load %arg12[%c0_40, %c0_41, %c0_42] : memref<1x8x32xf32, #tpu.memory_space<vmem>>, vector<1x8x32xf32>
    %78 = vector.shape_cast %77 : vector<1x8x32xf32> to vector<8x32xf32>
    %79 = vector.shape_cast %76 : vector<8x32xf32> to vector<1x8x32xf32>
    tpu.vector_store %arg12[%c0_40, %c0_41, %c0_42], %79 {strides = array<i32>} : memref<1x8x32xf32, #tpu.memory_space<vmem>>, vector<1x8x32xf32>,
    return
  }
  func.func @transform_0(%arg0: i32) -> (i32, i32, i32) {
    %c0_i32 = arith.constant 0 : i32
    %c0_i32_0 = arith.constant 0 : i32
    %c0_i32_1 = arith.constant 0 : i32
    return %arg0, %c0_i32, %c0_i32_0 : i32, i32, i32
  }
  func.func @transform_1(%arg0: i32) -> (i32, i32, i32) {
    %c0_i32 = arith.constant 0 : i32
    %c0_i32_0 = arith.constant 0 : i32
    %c0_i32_1 = arith.constant 0 : i32
    return %arg0, %c0_i32, %c0_i32_0 : i32, i32, i32
  }
  func.func @transform_2(%arg0: i32) -> (i32, i32, i32) {
    %c0_i32 = arith.constant 0 : i32
    %c0_i32_0 = arith.constant 0 : i32
    %c0_i32_1 = arith.constant 0 : i32
    return %arg0, %c0_i32, %c0_i32_0 : i32, i32, i32
  }
  func.func @transform_3(%arg0: i32) -> (i32, i32, i32) {
    %c0_i32 = arith.constant 0 : i32
    %c0_i32_0 = arith.constant 0 : i32
    %c0_i32_1 = arith.constant 0 : i32
    return %arg0, %c0_i32, %c0_i32_0 : i32, i32, i32
  }
  func.func @transform_4(%arg0: i32) -> (i32, i32) {
    %c0_i32 = arith.constant 0 : i32
    %c0_i32_0 = arith.constant 0 : i32
    %c0_i32_1 = arith.constant 0 : i32
    return %c0_i32, %c0_i32_0 : i32, i32
  }
  func.func @transform_5(%arg0: i32) -> (i32, i32) {
    %c0_i32 = arith.constant 0 : i32
    %c0_i32_0 = arith.constant 0 : i32
    %c0_i32_1 = arith.constant 0 : i32
    return %c0_i32, %c0_i32_0 : i32, i32
  }
  func.func @transform_6(%arg0: i32) -> (i32, i32) {
    %c0_i32 = arith.constant 0 : i32
    %c0_i32_0 = arith.constant 0 : i32
    %c0_i32_1 = arith.constant 0 : i32
    return %c0_i32, %c0_i32_0 : i32, i32
  }
  func.func @transform_7(%arg0: i32) -> (i32, i32) {
    %c0_i32 = arith.constant 0 : i32
    %c0_i32_0 = arith.constant 0 : i32
    %c0_i32_1 = arith.constant 0 : i32
    return %c0_i32, %c0_i32_0 : i32, i32
  }
  func.func @transform_8(%arg0: i32) -> (i32, i32) {
    %c0_i32 = arith.constant 0 : i32
    %c0_i32_0 = arith.constant 0 : i32
    %c0_i32_1 = arith.constant 0 : i32
    return %c0_i32, %c0_i32_0 : i32, i32
  }
  func.func @transform_9(%arg0: i32) -> (i32, i32) {
    %c0_i32 = arith.constant 0 : i32
    %c0_i32_0 = arith.constant 0 : i32
    %c0_i32_1 = arith.constant 0 : i32
    return %c0_i32, %c0_i32_0 : i32, i32
  }
  func.func @transform_10(%arg0: i32) -> (i32, i32, i32) {
    %c0_i32 = arith.constant 0 : i32
    %c0_i32_0 = arith.constant 0 : i32
    %c0_i32_1 = arith.constant 0 : i32
    return %arg0, %c0_i32, %c0_i32_0 : i32, i32, i32
  }
  func.func @transform_11(%arg0: i32) -> (i32, i32, i32) {
    %c0_i32 = arith.constant 0 : i32
    %c0_i32_0 = arith.constant 0 : i32
    %c0_i32_1 = arith.constant 0 : i32
    return %arg0, %c0_i32, %c0_i32_0 : i32, i32, i32
  }
}

</mosaic_0001>

<llo_original>
// kernel: multi_head_attention.1
$region0: #{multi_head_attention.1}
  #allocation0 [shape = 'u32[]', space=smem, size = 0x4, offset = 0x4, fixed_abs, tag = 'smem constant byte address 0x4 - core index']
  #allocation1 [shape = 'u32[72,128]{1,0:T(1,128)}', space=vmem, size = 0x9000, scoped, tag = 'internal scratch']
  %s0 = inlined_call_operand.vmem [shape: f32[2,8,32], index: 0, kind: input, shape index: {}]
  %s1 = inlined_call_operand.hbm [shape: f32[2,8,32], index: 1, kind: input, shape index: {}]
  %s2 = inlined_call_operand.hbm [shape: f32[2,8,32], index: 2, kind: input, shape index: {}]
  %s3 = inlined_call_operand.vmem [shape: f32[2,8,8], index: 3, kind: input, shape index: {}]
  %s4 = inlined_call_operand.hbm [shape: f32[32,32], index: 4, kind: input, shape index: {}]
  %s5 = inlined_call_operand.hbm [shape: f32[32,32], index: 5, kind: input, shape index: {}]
  %s6 = inlined_call_operand.hbm [shape: f32[32,32], index: 6, kind: input, shape index: {}]
  %s7 = inlined_call_operand.hbm [shape: f32[32,32], index: 7, kind: input, shape index: {}]
  %s8 = inlined_call_operand.vmem [shape: f32[1,32], index: 8, kind: input, shape index: {}]
  %s9 = inlined_call_operand.vmem [shape: f32[1,32], index: 9, kind: input, shape index: {}]
  %s10 = inlined_call_operand.hbm [shape: f32[2,8,32], index: 10, kind: output, shape index: {0}]
  %s11 = inlined_call_operand.vmem [shape: f32[2,8,32], index: 11, kind: output, shape index: {1}]
  %12 = xla_tuple %s10, %s11
  %s13 = sld [smem:[#allocation0]]
  $region105: #{multi_head_attention.1} parent=0
    _
  %s15 = ssub.s32 1, %s13
  %s16 = scalar_select 0, %s15, %s13
  $region1: #{multi_head_attention.1} parent=0
    #allocation2 [shape = 'u8[8192]{0}', space=vmem, size = 0x2000, scoped, tag = 'input window, operand 1']
    #allocation3 [shape = 's32[2]{0}', space=sflag, size = 0x8, scoped, tag = 'scoped memory for multi_head_attention.1']
    #allocation4 [shape = 's32[2]{0}', space=sflag, size = 0x8, scoped, tag = 'scoped memory for multi_head_attention.1']
    #allocation5 [shape = 'u8[8192]{0}', space=vmem, size = 0x2000, scoped, tag = 'input window, operand 2']
    #allocation6 [shape = 's32[2]{0}', space=sflag, size = 0x8, scoped, tag = 'scoped memory for multi_head_attention.1']
    #allocation7 [shape = 'u8[16384]{0}', space=vmem, size = 0x4000, scoped, tag = 'input window, operand 4, single buffered']
    #allocation8 [shape = 'u8[16384]{0}', space=vmem, size = 0x4000, scoped, tag = 'input window, operand 5, single buffered']
    #allocation9 [shape = 's32[1]{0}', space=sflag, size = 0x4, scoped, tag = 'scoped memory for multi_head_attention.1']
    #allocation10 [shape = 'u8[16384]{0}', space=vmem, size = 0x4000, scoped, tag = 'input window, operand 6, single buffered']
    #allocation11 [shape = 'u8[16384]{0}', space=vmem, size = 0x4000, scoped, tag = 'input window, operand 7, single buffered']
    #allocation12 [shape = 's32[1]{0}', space=sflag, size = 0x4, scoped, tag = 'scoped memory for multi_head_attention.1']
    #allocation13 [shape = 'u8[8192]{0}', space=vmem, size = 0x2000, scoped, tag = 'output window, operand 0']
    %17 = vsyncpa [#allocation3], 0
    %s18 = scalar_lea.sflag [#allocation3], 1
    %19 = vsyncpa %s18, 0
    %20 = vsyncpa [#allocation6], 0
    %s21 = scalar_lea.sflag [#allocation6], 1
    %22 = vsyncpa %s21, 0
    %23 = vsyncpa [#allocation9], 0
    %24 = vsyncpa [#allocation12], 0
    %25 = vsyncpa [#allocation4], 0
    %s26 = scalar_lea.sflag [#allocation4], 1
    %27 = vsyncpa %s26, 0
    loop: start=0, step=1, limit=4
    $region2: #{multi_head_attention.1} parent=1 // loop_pre_header
      _
    $region3: #{multi_head_attention.1} parent=1 // loop_header
      %s29 = sphi 0, %s33
      %p30 = scmp.ge.s32.totalorder %s29, 4
      %s39 = sphi 0, %s41
      %s42 = sphi 0, %s39
      %s43 = sphi 0, %s42
      %s59 = sphi 0, %s43
      %s65 = sphi 0, %s67
      %s68 = sphi 0, %s65
      %s69 = sphi 0, %s68
      %s85 = sphi 0, %s69
      %s91 = sphi 0, %s93
      %s94 = sphi 0, %s91
      %s95 = sphi 0, %s94
      %s111 = sphi 0, %s95
      %s117 = sphi 0, %s119
      %s120 = sphi 0, %s117
      %s121 = sphi 0, %s120
      %s137 = sphi 0, %s121
      %s141 = sphi 0, %s141
      %s143 = sphi 0, %s141
      %s144 = sphi 0, %s143
      %s158 = sphi 0, %s144
      %s162 = sphi 0, %s162
      %s164 = sphi 0, %s162
      %s165 = sphi 0, %s164
      %s179 = sphi 0, %s165
      %s183 = sphi 0, %s183
      %s185 = sphi 0, %s183
      %s186 = sphi 0, %s185
      %s200 = sphi 0, %s186
      %s204 = sphi 0, %s204
      %s206 = sphi 0, %s204
      %s207 = sphi 0, %s206
      %s221 = sphi 0, %s207
      %s225 = sphi 0, %s225
      %s227 = sphi 0, %s225
      %s228 = sphi 0, %s227
      %s242 = sphi 0, %s228
      %s246 = sphi 0, %s246
      %s248 = sphi 0, %s246
      %s249 = sphi 0, %s248
      %s263 = sphi 0, %s249
      %s269 = sphi 0, %s271
      %s272 = sphi 0, %s269
      %s273 = sphi 0, %s272
      %s289 = sphi 0, %s273
      %s295 = sphi 0, %s297
      %s298 = sphi 0, %s295
      %s299 = sphi 0, %s298
      %s315 = sphi 0, %s299
    $region4: #{multi_head_attention.1} parent=1 // loop_header_branch
      %32 = sbr.rel (%p30) target = $region8
    $region5: #{multi_head_attention.1} parent=1 // loop_body
      %s34 = ssub.s32 %s29, 1
      %s35 = ssub.s32 %s29, 2
      %s36 = sadd.s32 %s29, 1
      %s37 = ssub.s32 %s29, %s36
      %p38 = scmp.eq.s32.totalorder %s37, 0
      %s40 = sadd.s32 %s39, 1
      %s41 = scalar_select %p38, %s39, %s40
      %p44 = pneg %p38
      %p45 = scmp.eq.s32.totalorder %s29, 1
      %p46 = por %p44, %p45
      %p47 = scmp.ne.s32.totalorder %s39, %s42
      %p48 = scmp.eq.s32.totalorder %s29, 0
      %p49 = por %p47, %p48
      %p50 = scmp.ne.s32.totalorder %s39, %s42
      %p51 = scmp.eq.s32.totalorder %s34, 1
      %p52 = por %p50, %p51
      %p53 = scmp.ne.s32.totalorder %s42, %s43
      %p54 = scmp.eq.s32.totalorder %s34, 0
      %p55 = por %p53, %p54
      %p56 = scmp.ne.s32.totalorder %s42, %s43
      %p57 = scmp.eq.s32.totalorder %s35, 1
      %p58 = por %p56, %p57
      %p60 = scmp.ne.s32.totalorder %s43, %s59
      %p61 = scmp.eq.s32.totalorder %s35, 0
      %p62 = por %p60, %p61
      %s63 = ssub.s32 %s29, %s36
      %p64 = scmp.eq.s32.totalorder %s63, 0
      %s66 = sadd.s32 %s65, 1
      %s67 = scalar_select %p64, %s65, %s66
      %p70 = pneg %p64
      %p71 = scmp.eq.s32.totalorder %s29, 1
      %p72 = por %p70, %p71
      %p73 = scmp.ne.s32.totalorder %s65, %s68
      %p74 = scmp.eq.s32.totalorder %s29, 0
      %p75 = por %p73, %p74
      %p76 = scmp.ne.s32.totalorder %s65, %s68
      %p77 = scmp.eq.s32.totalorder %s34, 1
      %p78 = por %p76, %p77
      %p79 = scmp.ne.s32.totalorder %s68, %s69
      %p80 = scmp.eq.s32.totalorder %s34, 0
      %p81 = por %p79, %p80
      %p82 = scmp.ne.s32.totalorder %s68, %s69
      %p83 = scmp.eq.s32.totalorder %s35, 1
      %p84 = por %p82, %p83
      %p86 = scmp.ne.s32.totalorder %s69, %s85
      %p87 = scmp.eq.s32.totalorder %s35, 0
      %p88 = por %p86, %p87
      %s89 = ssub.s32 %s29, %s36
      %p90 = scmp.eq.s32.totalorder %s89, 0
      %s92 = sadd.s32 %s91, 1
      %s93 = scalar_select %p90, %s91, %s92
      %p96 = pneg %p90
      %p97 = scmp.eq.s32.totalorder %s29, 1
      %p98 = por %p96, %p97
      %p99 = scmp.ne.s32.totalorder %s91, %s94
      %p100 = scmp.eq.s32.totalorder %s29, 0
      %p101 = por %p99, %p100
      %p102 = scmp.ne.s32.totalorder %s91, %s94
      %p103 = scmp.eq.s32.totalorder %s34, 1
      %p104 = por %p102, %p103
      %p105 = scmp.ne.s32.totalorder %s94, %s95
      %p106 = scmp.eq.s32.totalorder %s34, 0
      %p107 = por %p105, %p106
      %p108 = scmp.ne.s32.totalorder %s94, %s95
      %p109 = scmp.eq.s32.totalorder %s35, 1
      %p110 = por %p108, %p109
      %p112 = scmp.ne.s32.totalorder %s95, %s111
      %p113 = scmp.eq.s32.totalorder %s35, 0
      %p114 = por %p112, %p113
      %s115 = ssub.s32 %s29, %s36
      %p116 = scmp.eq.s32.totalorder %s115, 0
      %s118 = sadd.s32 %s117, 1
      %s119 = scalar_select %p116, %s117, %s118
      %p122 = pneg %p116
      %p123 = scmp.eq.s32.totalorder %s29, 1
      %p124 = por %p122, %p123
      %p125 = scmp.ne.s32.totalorder %s117, %s120
      %p126 = scmp.eq.s32.totalorder %s29, 0
      %p127 = por %p125, %p126
      %p128 = scmp.ne.s32.totalorder %s117, %s120
      %p129 = scmp.eq.s32.totalorder %s34, 1
      %p130 = por %p128, %p129
      %p131 = scmp.ne.s32.totalorder %s120, %s121
      %p132 = scmp.eq.s32.totalorder %s34, 0
      %p133 = por %p131, %p132
      %p134 = scmp.ne.s32.totalorder %s120, %s121
      %p135 = scmp.eq.s32.totalorder %s35, 1
      %p136 = por %p134, %p135
      %p138 = scmp.ne.s32.totalorder %s121, %s137
      %p139 = scmp.eq.s32.totalorder %s35, 0
      %p140 = por %p138, %p139
      %s142 = sadd.s32 %s141, 1
      %p145 = scmp.eq.s32.totalorder %s29, 1
      %p146 = scmp.ne.s32.totalorder %s141, %s143
      %p147 = scmp.eq.s32.totalorder %s29, 0
      %p148 = por %p146, %p147
      %p149 = scmp.ne.s32.totalorder %s141, %s143
      %p150 = scmp.eq.s32.totalorder %s34, 1
      %p151 = por %p149, %p150
      %p152 = scmp.ne.s32.totalorder %s143, %s144
      %p153 = scmp.eq.s32.totalorder %s34, 0
      %p154 = por %p152, %p153
      %p155 = scmp.ne.s32.totalorder %s143, %s144
      %p156 = scmp.eq.s32.totalorder %s35, 1
      %p157 = por %p155, %p156
      %p159 = scmp.ne.s32.totalorder %s144, %s158
      %p160 = scmp.eq.s32.totalorder %s35, 0
      %p161 = por %p159, %p160
      %s163 = sadd.s32 %s162, 1
      %p166 = scmp.eq.s32.totalorder %s29, 1
      %p167 = scmp.ne.s32.totalorder %s162, %s164
      %p168 = scmp.eq.s32.totalorder %s29, 0
      %p169 = por %p167, %p168
      %p170 = scmp.ne.s32.totalorder %s162, %s164
      %p171 = scmp.eq.s32.totalorder %s34, 1
      %p172 = por %p170, %p171
      %p173 = scmp.ne.s32.totalorder %s164, %s165
      %p174 = scmp.eq.s32.totalorder %s34, 0
      %p175 = por %p173, %p174
      %p176 = scmp.ne.s32.totalorder %s164, %s165
      %p177 = scmp.eq.s32.totalorder %s35, 1
      %p178 = por %p176, %p177
      %p180 = scmp.ne.s32.totalorder %s165, %s179
      %p181 = scmp.eq.s32.totalorder %s35, 0
      %p182 = por %p180, %p181
      %s184 = sadd.s32 %s183, 1
      %p187 = scmp.eq.s32.totalorder %s29, 1
      %p188 = scmp.ne.s32.totalorder %s183, %s185
      %p189 = scmp.eq.s32.totalorder %s29, 0
      %p190 = por %p188, %p189
      %p191 = scmp.ne.s32.totalorder %s183, %s185
      %p192 = scmp.eq.s32.totalorder %s34, 1
      %p193 = por %p191, %p192
      %p194 = scmp.ne.s32.totalorder %s185, %s186
      %p195 = scmp.eq.s32.totalorder %s34, 0
      %p196 = por %p194, %p195
      %p197 = scmp.ne.s32.totalorder %s185, %s186
      %p198 = scmp.eq.s32.totalorder %s35, 1
      %p199 = por %p197, %p198
      %p201 = scmp.ne.s32.totalorder %s186, %s200
      %p202 = scmp.eq.s32.totalorder %s35, 0
      %p203 = por %p201, %p202
      %s205 = sadd.s32 %s204, 1
      %p208 = scmp.eq.s32.totalorder %s29, 1
      %p209 = scmp.ne.s32.totalorder %s204, %s206
      %p210 = scmp.eq.s32.totalorder %s29, 0
      %p211 = por %p209, %p210
      %p212 = scmp.ne.s32.totalorder %s204, %s206
      %p213 = scmp.eq.s32.totalorder %s34, 1
      %p214 = por %p212, %p213
      %p215 = scmp.ne.s32.totalorder %s206, %s207
      %p216 = scmp.eq.s32.totalorder %s34, 0
      %p217 = por %p215, %p216
      %p218 = scmp.ne.s32.totalorder %s206, %s207
      %p219 = scmp.eq.s32.totalorder %s35, 1
      %p220 = por %p218, %p219
      %p222 = scmp.ne.s32.totalorder %s207, %s221
      %p223 = scmp.eq.s32.totalorder %s35, 0
      %p224 = por %p222, %p223
      %s226 = sadd.s32 %s225, 1
      %p229 = scmp.eq.s32.totalorder %s29, 1
      %p230 = scmp.ne.s32.totalorder %s225, %s227
      %p231 = scmp.eq.s32.totalorder %s29, 0
      %p232 = por %p230, %p231
      %p233 = scmp.ne.s32.totalorder %s225, %s227
      %p234 = scmp.eq.s32.totalorder %s34, 1
      %p235 = por %p233, %p234
      %p236 = scmp.ne.s32.totalorder %s227, %s228
      %p237 = scmp.eq.s32.totalorder %s34, 0
      %p238 = por %p236, %p237
      %p239 = scmp.ne.s32.totalorder %s227, %s228
      %p240 = scmp.eq.s32.totalorder %s35, 1
      %p241 = por %p239, %p240
      %p243 = scmp.ne.s32.totalorder %s228, %s242
      %p244 = scmp.eq.s32.totalorder %s35, 0
      %p245 = por %p243, %p244
      %s247 = sadd.s32 %s246, 1
      %p250 = scmp.eq.s32.totalorder %s29, 1
      %p251 = scmp.ne.s32.totalorder %s246, %s248
      %p252 = scmp.eq.s32.totalorder %s29, 0
      %p253 = por %p251, %p252
      %p254 = scmp.ne.s32.totalorder %s246, %s248
      %p255 = scmp.eq.s32.totalorder %s34, 1
      %p256 = por %p254, %p255
      %p257 = scmp.ne.s32.totalorder %s248, %s249
      %p258 = scmp.eq.s32.totalorder %s34, 0
      %p259 = por %p257, %p258
      %p260 = scmp.ne.s32.totalorder %s248, %s249
      %p261 = scmp.eq.s32.totalorder %s35, 1
      %p262 = por %p260, %p261
      %p264 = scmp.ne.s32.totalorder %s249, %s263
      %p265 = scmp.eq.s32.totalorder %s35, 0
      %p266 = por %p264, %p265
      %s267 = ssub.s32 %s29, %s36
      %p268 = scmp.eq.s32.totalorder %s267, 0
      %s270 = sadd.s32 %s269, 1
      %s271 = scalar_select %p268, %s269, %s270
      %p274 = pneg %p268
      %p275 = scmp.eq.s32.totalorder %s29, 1
      %p276 = por %p274, %p275
      %p277 = scmp.ne.s32.totalorder %s269, %s272
      %p278 = scmp.eq.s32.totalorder %s29, 0
      %p279 = por %p277, %p278
      %p280 = scmp.ne.s32.totalorder %s269, %s272
      %p281 = scmp.eq.s32.totalorder %s34, 1
      %p282 = por %p280, %p281
      %p283 = scmp.ne.s32.totalorder %s272, %s273
      %p284 = scmp.eq.s32.totalorder %s34, 0
      %p285 = por %p283, %p284
      %p286 = scmp.ne.s32.totalorder %s272, %s273
      %p287 = scmp.eq.s32.totalorder %s35, 1
      %p288 = por %p286, %p287
      %p290 = scmp.ne.s32.totalorder %s273, %s289
      %p291 = scmp.eq.s32.totalorder %s35, 0
      %p292 = por %p290, %p291
      %s293 = ssub.s32 %s29, %s36
      %p294 = scmp.eq.s32.totalorder %s293, 0
      %s296 = sadd.s32 %s295, 1
      %s297 = scalar_select %p294, %s295, %s296
      %p300 = pneg %p294
      %p301 = scmp.eq.s32.totalorder %s29, 1
      %p302 = por %p300, %p301
      %p303 = scmp.ne.s32.totalorder %s295, %s298
      %p304 = scmp.eq.s32.totalorder %s29, 0
      %p305 = por %p303, %p304
      %p306 = scmp.ne.s32.totalorder %s295, %s298
      %p307 = scmp.eq.s32.totalorder %s34, 1
      %p308 = por %p306, %p307
      %p309 = scmp.ne.s32.totalorder %s298, %s299
      %p310 = scmp.eq.s32.totalorder %s34, 0
      %p311 = por %p309, %p310
      %p312 = scmp.ne.s32.totalorder %s298, %s299
      %p313 = scmp.eq.s32.totalorder %s35, 1
      %p314 = por %p312, %p313
      %p316 = scmp.ne.s32.totalorder %s299, %s315
      %p317 = scmp.eq.s32.totalorder %s35, 0
      %p318 = por %p316, %p317
      %p319 = scmp.le.s32.totalorder 1, %s29
      %p320 = scmp.lt.s32.totalorder %s29, 3
      %p321 = pnand %p319, %p320
      %p322 = pneg %p321
      // Predicated region
      $region9: #{multi_head_attention.1} parent=5 // pred_check
        _
      $region10: #{multi_head_attention.1} parent=5 // pred_check_branch
        %324 = sbr.rel (%p321) target = $region12
      $region11: #{multi_head_attention.1} parent=5 // pred_region
        %s325 = ssub.s32 %s29, 1
        // Predicated region
        $region13: #{multi_head_attention.1} parent=11 // pred_check
          %p326 = pneg %p154
        $region14: #{multi_head_attention.1} parent=11 // pred_check_branch
          %328 = sbr.rel (%p326) target = $region16
        $region15: #{multi_head_attention.1} parent=11 // pred_region
          %330 = vsyncadd [#allocation6], 0
          %s331 = sshll.u32 %s4, 4
          %s332 = int_to_ptr.hbm [resolvable:$true] %s331
          %s333 = sshll.u32 [#allocation7], 4
          %s334 = int_to_ptr.vmem [resolvable:$true] %s333
          %339 = dma.hbm_to_vmem [thread:$0]  %s332, 512, %s334, [#allocation6], 128, 128, 8
        $region16: #{multi_head_attention.1} parent=11 // pred_fallthru
          _
        // Predicated region
        $region17: #{multi_head_attention.1} parent=11 // pred_check
          %p340 = pneg %p175
        $region18: #{multi_head_attention.1} parent=11 // pred_check_branch
          %342 = sbr.rel (%p340) target = $region20
        $region19: #{multi_head_attention.1} parent=11 // pred_region
          %344 = vsyncadd [#allocation9], 0
          %s345 = sshll.u32 %s5, 4
          %s346 = int_to_ptr.hbm [resolvable:$true] %s345
          %s347 = sshll.u32 [#allocation8], 4
          %s348 = int_to_ptr.vmem [resolvable:$true] %s347
          %353 = dma.hbm_to_vmem [thread:$0]  %s346, 512, %s348, [#allocation9], 128, 128, 8
        $region20: #{multi_head_attention.1} parent=11 // pred_fallthru
          _
        // Predicated region
        $region21: #{multi_head_attention.1} parent=11 // pred_check
          %p354 = pneg %p196
        $region22: #{multi_head_attention.1} parent=11 // pred_check_branch
          %356 = sbr.rel (%p354) target = $region24
        $region23: #{multi_head_attention.1} parent=11 // pred_region
          %358 = vsyncadd [#allocation9], 0
          %s359 = sshll.u32 %s6, 4
          %s360 = int_to_ptr.hbm [resolvable:$true] %s359
          %s361 = sshll.u32 [#allocation10], 4
          %s362 = int_to_ptr.vmem [resolvable:$true] %s361
          %367 = dma.hbm_to_vmem [thread:$0]  %s360, 512, %s362, [#allocation9], 128, 128, 8
        $region24: #{multi_head_attention.1} parent=11 // pred_fallthru
          _
        // Predicated region
        $region25: #{multi_head_attention.1} parent=11 // pred_check
          %p368 = pneg %p217
        $region26: #{multi_head_attention.1} parent=11 // pred_check_branch
          %370 = sbr.rel (%p368) target = $region28
        $region27: #{multi_head_attention.1} parent=11 // pred_region
          %372 = vsyncadd [#allocation12], 0
          %s373 = sshll.u32 %s7, 4
          %s374 = int_to_ptr.hbm [resolvable:$true] %s373
          %s375 = sshll.u32 [#allocation11], 4
          %s376 = int_to_ptr.vmem [resolvable:$true] %s375
          %381 = dma.hbm_to_vmem [thread:$0]  %s374, 512, %s376, [#allocation12], 128, 128, 8
        $region28: #{multi_head_attention.1} parent=11 // pred_fallthru
          _
        // Predicated region
        $region29: #{multi_head_attention.1} parent=11 // pred_check
          %p382 = pneg %p238
        $region30: #{multi_head_attention.1} parent=11 // pred_check_branch
          %384 = sbr.rel (%p382) target = $region32
        $region31: #{multi_head_attention.1} parent=11 // pred_region
          _
        $region32: #{multi_head_attention.1} parent=11 // pred_fallthru
          _
        // Predicated region
        $region33: #{multi_head_attention.1} parent=11 // pred_check
          %p385 = pneg %p259
        $region34: #{multi_head_attention.1} parent=11 // pred_check_branch
          %387 = sbr.rel (%p385) target = $region36
        $region35: #{multi_head_attention.1} parent=11 // pred_region
          _
        $region36: #{multi_head_attention.1} parent=11 // pred_fallthru
          _
      $region12: #{multi_head_attention.1} parent=5 // pred_fallthru
        _
      %p388 = scmp.lt.s32.totalorder %s29, 2
      // Predicated region
      $region37: #{multi_head_attention.1} parent=5 // pred_check
        %p389 = pneg %p388
      $region38: #{multi_head_attention.1} parent=5 // pred_check_branch
        %391 = sbr.rel (%p389) target = $region40
      $region39: #{multi_head_attention.1} parent=5 // pred_region
        // Predicated region
        $region41: #{multi_head_attention.1} parent=39 // pred_check
          %p392 = pneg %p49
        $region42: #{multi_head_attention.1} parent=39 // pred_check_branch
          %394 = sbr.rel (%p392) target = $region44
        $region43: #{multi_head_attention.1} parent=39 // pred_region
          %p395 = scmp.lt.s32.totalorder %s29, 1
          %s396 = scalar_select %p395, %s29, 1
          %s397 = smul.addr %s396, 8
          %s398 = scalar_lea.vmem %s0, %s397
        $region44: #{multi_head_attention.1} parent=39 // pred_fallthru
          _
        // Predicated region
        $region45: #{multi_head_attention.1} parent=39 // pred_check
          %p399 = pneg %p75
        $region46: #{multi_head_attention.1} parent=39 // pred_check_branch
          %401 = sbr.rel (%p399) target = $region48
        $region47: #{multi_head_attention.1} parent=39 // pred_region
          %s402 = sand.u32 %s65, 1
          %s403 = scalar_lea.sflag [#allocation3], %s402
          %s404 = sand.u32 %s65, 1
          %s405 = smul.addr %s404, 8
          %s406 = scalar_lea.vmem [#allocation2], %s405
          %408 = vsyncadd %s403, 0
          %s409 = smul.addr %s29, 8
          %s410 = scalar_lea.hbm %s1, %s409
          %s412 = sshll.u32 %s410, 4
          %s413 = int_to_ptr.hbm [resolvable:$true] %s412
          %s414 = sshll.u32 %s406, 4
          %s415 = int_to_ptr.vmem [resolvable:$true] %s414
          %417 = dma.hbm_to_vmem [thread:$0]  %s413, 128, %s415, %s403
        $region48: #{multi_head_attention.1} parent=39 // pred_fallthru
          _
        // Predicated region
        $region49: #{multi_head_attention.1} parent=39 // pred_check
          %p418 = pneg %p101
        $region50: #{multi_head_attention.1} parent=39 // pred_check_branch
          %420 = sbr.rel (%p418) target = $region52
        $region51: #{multi_head_attention.1} parent=39 // pred_region
          %s421 = sand.u32 %s29, 1
          %s422 = scalar_lea.sflag [#allocation6], %s421
          %s423 = sand.u32 %s91, 1
          %s424 = smul.addr %s423, 8
          %s425 = scalar_lea.vmem [#allocation5], %s424
          %427 = vsyncadd %s422, 0
          %s428 = smul.addr %s29, 8
          %s429 = scalar_lea.hbm %s2, %s428
          %s431 = sshll.u32 %s429, 4
          %s432 = int_to_ptr.hbm [resolvable:$true] %s431
          %s433 = sshll.u32 %s425, 4
          %s434 = int_to_ptr.vmem [resolvable:$true] %s433
          %436 = dma.hbm_to_vmem [thread:$0]  %s432, 128, %s434, %s422
        $region52: #{multi_head_attention.1} parent=39 // pred_fallthru
          _
        // Predicated region
        $region53: #{multi_head_attention.1} parent=39 // pred_check
          %p437 = pneg %p127
        $region54: #{multi_head_attention.1} parent=39 // pred_check_branch
          %439 = sbr.rel (%p437) target = $region56
        $region55: #{multi_head_attention.1} parent=39 // pred_region
          %p440 = scmp.lt.s32.totalorder %s29, 1
          %s441 = scalar_select %p440, %s29, 1
          %s442 = smul.addr %s441, 8
          %s443 = scalar_lea.vmem %s3, %s442
        $region56: #{multi_head_attention.1} parent=39 // pred_fallthru
          _
      $region40: #{multi_head_attention.1} parent=5 // pred_fallthru
        _
      %p444 = scmp.le.s32.totalorder 1, %s29
      %p445 = scmp.lt.s32.totalorder %s29, 3
      %p446 = pnand %p444, %p445
      %p447 = pneg %p446
      // Predicated region
      $region57: #{multi_head_attention.1} parent=5 // pred_check
        _
      $region58: #{multi_head_attention.1} parent=5 // pred_check_branch
        %449 = sbr.rel (%p446) target = $region60
      $region59: #{multi_head_attention.1} parent=5 // pred_region
        %s450 = ssub.s32 %s29, 1
        %s451 = sand.u32 %s68, 1
        %s452 = scalar_lea.sflag [#allocation3], %s451
        %s453 = sand.u32 %s68, 1
        %s454 = smul.addr %s453, 8
        %s455 = scalar_lea.vmem [#allocation2], %s454
        // Predicated region
        $region61: #{multi_head_attention.1} parent=59 // pred_check
          %p456 = pneg %p81
        $region62: #{multi_head_attention.1} parent=59 // pred_check_branch
          %458 = sbr.rel (%p456) target = $region64
        $region63: #{multi_head_attention.1} parent=59 // pred_region
          %460 = dma.done %s452, 128
        $region64: #{multi_head_attention.1} parent=59 // pred_fallthru
          _
        %s461 = sand.u32 %s34, 1
        %s462 = scalar_lea.sflag [#allocation6], %s461
        %s463 = sand.u32 %s94, 1
        %s464 = smul.addr %s463, 8
        %s465 = scalar_lea.vmem [#allocation5], %s464
        // Predicated region
        $region65: #{multi_head_attention.1} parent=59 // pred_check
          %p466 = pneg %p107
        $region66: #{multi_head_attention.1} parent=59 // pred_check_branch
          %468 = sbr.rel (%p466) target = $region68
        $region67: #{multi_head_attention.1} parent=59 // pred_region
          %470 = dma.done %s462, 128
        $region68: #{multi_head_attention.1} parent=59 // pred_fallthru
          _
        // Predicated region
        $region69: #{multi_head_attention.1} parent=59 // pred_check
          %p471 = pneg %p154
        $region70: #{multi_head_attention.1} parent=59 // pred_check_branch
          %473 = sbr.rel (%p471) target = $region72
        $region71: #{multi_head_attention.1} parent=59 // pred_region
          %475 = dma.done [#allocation6], 512
        $region72: #{multi_head_attention.1} parent=59 // pred_fallthru
          _
        // Predicated region
        $region73: #{multi_head_attention.1} parent=59 // pred_check
          %p476 = pneg %p175
        $region74: #{multi_head_attention.1} parent=59 // pred_check_branch
          %478 = sbr.rel (%p476) target = $region76
        $region75: #{multi_head_attention.1} parent=59 // pred_region
          %480 = dma.done [#allocation9], 512
        $region76: #{multi_head_attention.1} parent=59 // pred_fallthru
          _
        // Predicated region
        $region77: #{multi_head_attention.1} parent=59 // pred_check
          %p481 = pneg %p196
        $region78: #{multi_head_attention.1} parent=59 // pred_check_branch
          %483 = sbr.rel (%p481) target = $region80
        $region79: #{multi_head_attention.1} parent=59 // pred_region
          %485 = dma.done [#allocation9], 512
        $region80: #{multi_head_attention.1} parent=59 // pred_fallthru
          _
        // Predicated region
        $region81: #{multi_head_attention.1} parent=59 // pred_check
          %p486 = pneg %p217
        $region82: #{multi_head_attention.1} parent=59 // pred_check_branch
          %488 = sbr.rel (%p486) target = $region84
        $region83: #{multi_head_attention.1} parent=59 // pred_region
          %490 = dma.done [#allocation12], 512
        $region84: #{multi_head_attention.1} parent=59 // pred_fallthru
          _
        %p491 = scmp.lt.s32.totalorder %s34, 1
        %s492 = scalar_select %p491, %s34, 1
        %s493 = smul.addr %s492, 8
        %s494 = scalar_lea.vmem %s0, %s493
        %p495 = pneg %p55
        %p496 = pneg %p52
        %s497 = sand.u32 %s68, 1
        %s498 = scalar_lea.sflag [#allocation3], %s497
        %s499 = sand.u32 %s68, 1
        %s500 = smul.addr %s499, 8
        %s501 = scalar_lea.vmem [#allocation2], %s500
        %p502 = pneg %p81
        %p503 = pneg %p78
        %s504 = sand.u32 %s34, 1
        %s505 = scalar_lea.sflag [#allocation6], %s504
        %s506 = sand.u32 %s94, 1
        %s507 = smul.addr %s506, 8
        %s508 = scalar_lea.vmem [#allocation5], %s507
        %p509 = pneg %p107
        %p510 = pneg %p104
        %p511 = scmp.lt.s32.totalorder %s34, 1
        %s512 = scalar_select %p511, %s34, 1
        %s513 = smul.addr %s512, 8
        %s514 = scalar_lea.vmem %s3, %s513
        %p515 = pneg %p133
        %p516 = pneg %p130
        %p517 = pneg %p154
        %p518 = pneg %p151
        %p519 = pneg %p175
        %p520 = pneg %p172
        %p521 = pneg %p196
        %p522 = pneg %p193
        %p523 = pneg %p217
        %p524 = pneg %p214
        %p525 = pneg %p238
        %p526 = pneg %p235
        %p527 = pneg %p259
        %p528 = pneg %p256
        %p529 = pneg %p285
        %p530 = pneg %p282
        %s531 = sand.u32 %s272, 1
        %s532 = scalar_lea.sflag [#allocation4], %s531
        %s533 = sand.u32 %s272, 1
        %s534 = smul.addr %s533, 8
        %s535 = scalar_lea.vmem [#allocation13], %s534
        %p536 = pneg %p311
        %p537 = pneg %p308
        %p538 = scmp.lt.s32.totalorder %s34, 1
        %s539 = scalar_select %p538, %s34, 1
        %s540 = smul.addr %s539, 8
        %s541 = scalar_lea.vmem %s11, %s540
        %p542 = scmp.lt.s32.totalorder %s34, 1
        %s543 = scalar_select %p542, %s34, 1
        %s544 = smul.addr %s543, 8
        %s545 = scalar_lea.vmem %s0, %s544
        %p546 = scmp.lt.s32.totalorder %s34, 1
        %s547 = scalar_select %p546, %s34, 1
        %s548 = smul.addr %s547, 8
        %s549 = scalar_lea.vmem %s3, %s548
        %p550 = scmp.lt.s32.totalorder %s34, 1
        %s551 = scalar_select %p550, %s34, 1
        %s552 = smul.addr %s551, 8
        %s553 = scalar_lea.vmem %s11, %s552
        %v554 = vld [vmem:[%s545] sm:$0xff]
        %v555 = vld [vmem:[%s455] sm:$0xff]
        %v556 = vld [vmem:[%s465] sm:$0xff]
        %v557 = vld [vmem:[%s549] sm:$0xff]
        %v558 = vld [vmem:[#allocation7] sm:$0xff]
        %v559 = vld [vmem:[#allocation7 + $0x8] sm:$0xff]
        %v560 = vld [vmem:[#allocation7 + $0x10] sm:$0xff]
        %v561 = vld [vmem:[#allocation7 + $0x18] sm:$0xff]
        %vm562 = vcmask 261120
        %v564 = vsel %vm562, %v554, 0
        %566 = vmatpush.msra.mxu0 0.0
        %567 = vmatpush.msra.mxu0 0.0
        %568 = vmatpush.msra.mxu0 0.0
        %569 = vmatpush.msra.mxu0 0.0
        %570 = vmatpush.msra.mxu0 0.0
        %571 = vmatpush.msra.mxu0 0.0
        %572 = vmatpush.msra.mxu0 0.0
        %573 = vmatpush.msra.mxu0 0.0
        %574 = vmatpush.msra.mxu0 0.0
        %575 = vmatpush.msra.mxu0 0.0
        %576 = vmatpush.msra.mxu0 0.0
        %577 = vmatpush.msra.mxu0 0.0
        %578 = vmatpush.msra.mxu0 %v561
        %579 = vmatpush.msra.mxu0 %v560
        %580 = vmatpush.msra.mxu0 %v559
        %581 = vmatpush.msra.mxu0 %v558
        %582 = vmatmul.f32.gmra.mxu0 %v564
        %v583 = vpop.f32.mrf.mxu0
        %v584 = vadd.f32 0.0, %v583
        %585 = vdwg.mxu0
        %v586 = vld [vmem:[#allocation8] sm:$0xff]
        %v587 = vld [vmem:[#allocation8 + $0x8] sm:$0xff]
        %v588 = vld [vmem:[#allocation8 + $0x10] sm:$0xff]
        %v589 = vld [vmem:[#allocation8 + $0x18] sm:$0xff]
        %v591 = vsel %vm562, %v555, 0
        %593 = vmatpush.msra.mxu0 0.0
        %594 = vmatpush.msra.mxu0 0.0
        %595 = vmatpush.msra.mxu0 0.0
        %596 = vmatpush.msra.mxu0 0.0
        %597 = vmatpush.msra.mxu0 0.0
        %598 = vmatpush.msra.mxu0 0.0
        %599 = vmatpush.msra.mxu0 0.0
        %600 = vmatpush.msra.mxu0 0.0
        %601 = vmatpush.msra.mxu0 0.0
        %602 = vmatpush.msra.mxu0 0.0
        %603 = vmatpush.msra.mxu0 0.0
        %604 = vmatpush.msra.mxu0 0.0
        %605 = vmatpush.msra.mxu0 %v589
        %606 = vmatpush.msra.mxu0 %v588
        %607 = vmatpush.msra.mxu0 %v587
        %608 = vmatpush.msra.mxu0 %v586
        %609 = vmatmul.f32.gmra.mxu0 %v591
        %v610 = vpop.f32.mrf.mxu0
        %v611 = vadd.f32 0.0, %v610
        %612 = vdwg.mxu0
        %v613 = vld [vmem:[#allocation10] sm:$0xff]
        %v614 = vld [vmem:[#allocation10 + $0x8] sm:$0xff]
        %v615 = vld [vmem:[#allocation10 + $0x10] sm:$0xff]
        %v616 = vld [vmem:[#allocation10 + $0x18] sm:$0xff]
        %v618 = vsel %vm562, %v556, 0
        %620 = vmatpush.msra.mxu0 0.0
        %621 = vmatpush.msra.mxu0 0.0
        %622 = vmatpush.msra.mxu0 0.0
        %623 = vmatpush.msra.mxu0 0.0
        %624 = vmatpush.msra.mxu0 0.0
        %625 = vmatpush.msra.mxu0 0.0
        %626 = vmatpush.msra.mxu0 0.0
        %627 = vmatpush.msra.mxu0 0.0
        %628 = vmatpush.msra.mxu0 0.0
        %629 = vmatpush.msra.mxu0 0.0
        %630 = vmatpush.msra.mxu0 0.0
        %631 = vmatpush.msra.mxu0 0.0
        %632 = vmatpush.msra.mxu0 %v616
        %633 = vmatpush.msra.mxu0 %v615
        %634 = vmatpush.msra.mxu0 %v614
        %635 = vmatpush.msra.mxu0 %v613
        %636 = vmatmul.f32.gmra.mxu0 %v618
        %v637 = vpop.f32.mrf.mxu0
        %v638 = vadd.f32 0.0, %v637
        %639 = vdwg.mxu0
        %641 = vrot.lane.b32.xlu0 %v584, 120
        %v642 = vpop.permute.xlu0 %641
        %644 = vrot.lane.b32.xlu0 %v584, 112
        %v645 = vpop.permute.xlu0 %644
        %647 = vrot.lane.b32.xlu0 %v584, 104
        %v648 = vpop.permute.xlu0 %647
        %v650 = vrot.slane %v645, 4
        %vm651 = vcmask 1047556
        %v652 = vsel %vm651, %v650, %v584
        %v653 = vrot.slane %v584, 4
        %v654 = vsel %vm651, %v645, %v653
        %v656 = vunpack.c.l.s4 1983009808
        %v657 = vunpack.c.0.s8 %v656
        %v658 = vperm.slane %v652, %v657
        %v660 = vunpack.c.l.s4 1983009808
        %v661 = vunpack.c.0.s8 %v660
        %v662 = vperm.slane %v654, %v661
        %v663 = vrot.slane %v648, 4
        %v664 = vsel %vm651, %v663, %v642
        %v665 = vrot.slane %v642, 4
        %v666 = vsel %vm651, %v648, %v665
        %v668 = vunpack.c.l.s4 1983009808
        %v669 = vunpack.c.0.s8 %v668
        %v670 = vperm.slane %v664, %v669
        %v672 = vunpack.c.l.s4 1983009808
        %v673 = vunpack.c.0.s8 %v672
        %v674 = vperm.slane %v666, %v673
        %v675 = vrot.slane %v670, 4
        %v676 = vsel %vm651, %v675, %v658
        %v677 = vrot.slane %v658, 4
        %v678 = vsel %vm651, %v670, %v677
        %v680 = vunpack.c.l.s4 1934713408
        %v681 = vunpack.c.0.s8 %v680
        %v682 = vperm.slane %v676, %v681
        %v684 = vunpack.c.l.s4 1934713408
        %v685 = vunpack.c.0.s8 %v684
        %v686 = vperm.slane %v678, %v685
        %v687 = vrot.slane %v674, 4
        %v688 = vsel %vm651, %v687, %v662
        %v689 = vrot.slane %v662, 4
        %v690 = vsel %vm651, %v674, %v689
        %v692 = vunpack.c.l.s4 1934713408
        %v693 = vunpack.c.0.s8 %v692
        %v694 = vperm.slane %v688, %v693
        %v696 = vunpack.c.l.s4 1934713408
        %v697 = vunpack.c.0.s8 %v696
        %v698 = vperm.slane %v690, %v697
        %v699 = vrot.slane %v682, 4
        %v700 = vsel %vm651, 0.0, %v699
        %v701 = vrot.slane %v686, 4
        %v702 = vsel %vm651, 0.0, %v701
        %v703 = vrot.slane %v694, 4
        %v704 = vsel %vm651, 0.0, %v703
        %v705 = vrot.slane %v698, 4
        %v706 = vsel %vm651, 0.0, %v705
        %v707 = vsel %vm651, %v701, %v682
        %v709 = vunpack.c.l.s4 1983009808
        %v710 = vunpack.c.0.s8 %v709
        %v711 = vperm.slane %v707, %v710
        %v712 = vrot.slane %v702, 4
        %v713 = vsel %vm651, %v712, %v700
        %v715 = vunpack.c.l.s4 1983009808
        %v716 = vunpack.c.0.s8 %v715
        %v717 = vperm.slane %v713, %v716
        %v718 = vsel %vm651, %v705, %v694
        %v720 = vunpack.c.l.s4 1983009808
        %v721 = vunpack.c.0.s8 %v720
        %v722 = vperm.slane %v718, %v721
        %v723 = vrot.slane %v706, 4
        %v724 = vsel %vm651, %v723, %v704
        %v726 = vunpack.c.l.s4 1983009808
        %v727 = vunpack.c.0.s8 %v726
        %v728 = vperm.slane %v724, %v727
        %v729 = vrot.slane %v717, 4
        %v730 = vsel %vm651, %v729, %v711
        %v731 = vrot.slane %v711, 4
        %v732 = vsel %vm651, %v717, %v731
        %v734 = vunpack.c.l.s4 1934713408
        %v735 = vunpack.c.0.s8 %v734
        %v736 = vperm.slane %v730, %v735
        %v738 = vunpack.c.l.s4 1934713408
        %v739 = vunpack.c.0.s8 %v738
        %v740 = vperm.slane %v732, %v739
        %v741 = vrot.slane %v728, 4
        %v742 = vsel %vm651, %v741, %v722
        %v743 = vrot.slane %v722, 4
        %v744 = vsel %vm651, %v728, %v743
        %v746 = vunpack.c.l.s4 1934713408
        %v747 = vunpack.c.0.s8 %v746
        %v748 = vperm.slane %v742, %v747
        %v750 = vunpack.c.l.s4 1934713408
        %v751 = vunpack.c.0.s8 %v750
        %v752 = vperm.slane %v744, %v751
        %v753 = vrot.slane %v748, 4
        %v754 = vsel %vm651, %v753, %v736
        %v755 = vrot.slane %v736, 4
        %v756 = vsel %vm651, %v748, %v755
        %v757 = vrot.slane %v752, 4
        %v758 = vsel %vm651, %v757, %v740
        %v759 = vrot.slane %v740, 4
        %v760 = vsel %vm651, %v752, %v759
        %762 = vrot.lane.b32.xlu0 %v611, 120
        %v763 = vpop.permute.xlu0 %762
        %765 = vrot.lane.b32.xlu0 %v611, 112
        %v766 = vpop.permute.xlu0 %765
        %768 = vrot.lane.b32.xlu0 %v611, 104
        %v769 = vpop.permute.xlu0 %768
        %v771 = vrot.slane %v766, 4
        %v772 = vsel %vm651, %v771, %v611
        %v773 = vrot.slane %v611, 4
        %v774 = vsel %vm651, %v766, %v773
        %v776 = vunpack.c.l.s4 1983009808
        %v777 = vunpack.c.0.s8 %v776
        %v778 = vperm.slane %v772, %v777
        %v780 = vunpack.c.l.s4 1983009808
        %v781 = vunpack.c.0.s8 %v780
        %v782 = vperm.slane %v774, %v781
        %v783 = vrot.slane %v769, 4
        %v784 = vsel %vm651, %v783, %v763
        %v785 = vrot.slane %v763, 4
        %v786 = vsel %vm651, %v769, %v785
        %v788 = vunpack.c.l.s4 1983009808
        %v789 = vunpack.c.0.s8 %v788
        %v790 = vperm.slane %v784, %v789
        %v792 = vunpack.c.l.s4 1983009808
        %v793 = vunpack.c.0.s8 %v792
        %v794 = vperm.slane %v786, %v793
        %v795 = vrot.slane %v790, 4
        %v796 = vsel %vm651, %v795, %v778
        %v797 = vrot.slane %v778, 4
        %v798 = vsel %vm651, %v790, %v797
        %v800 = vunpack.c.l.s4 1934713408
        %v801 = vunpack.c.0.s8 %v800
        %v802 = vperm.slane %v796, %v801
        %v804 = vunpack.c.l.s4 1934713408
        %v805 = vunpack.c.0.s8 %v804
        %v806 = vperm.slane %v798, %v805
        %v807 = vrot.slane %v794, 4
        %v808 = vsel %vm651, %v807, %v782
        %v809 = vrot.slane %v782, 4
        %v810 = vsel %vm651, %v794, %v809
        %v812 = vunpack.c.l.s4 1934713408
        %v813 = vunpack.c.0.s8 %v812
        %v814 = vperm.slane %v808, %v813
        %v816 = vunpack.c.l.s4 1934713408
        %v817 = vunpack.c.0.s8 %v816
        %v818 = vperm.slane %v810, %v817
        %v819 = vrot.slane %v802, 4
        %v820 = vsel %vm651, 0.0, %v819
        %v821 = vrot.slane %v806, 4
        %v822 = vsel %vm651, 0.0, %v821
        %v823 = vrot.slane %v814, 4
        %v824 = vsel %vm651, 0.0, %v823
        %v825 = vrot.slane %v818, 4
        %v826 = vsel %vm651, 0.0, %v825
        %v827 = vsel %vm651, %v821, %v802
        %v829 = vunpack.c.l.s4 1983009808
        %v830 = vunpack.c.0.s8 %v829
        %v831 = vperm.slane %v827, %v830
        %v832 = vrot.slane %v822, 4
        %v833 = vsel %vm651, %v832, %v820
        %v835 = vunpack.c.l.s4 1983009808
        %v836 = vunpack.c.0.s8 %v835
        %v837 = vperm.slane %v833, %v836
        %v838 = vsel %vm651, %v825, %v814
        %v840 = vunpack.c.l.s4 1983009808
        %v841 = vunpack.c.0.s8 %v840
        %v842 = vperm.slane %v838, %v841
        %v843 = vrot.slane %v826, 4
        %v844 = vsel %vm651, %v843, %v824
        %v846 = vunpack.c.l.s4 1983009808
        %v847 = vunpack.c.0.s8 %v846
        %v848 = vperm.slane %v844, %v847
        %v849 = vrot.slane %v837, 4
        %v850 = vsel %vm651, %v849, %v831
        %v851 = vrot.slane %v831, 4
        %v852 = vsel %vm651, %v837, %v851
        %v854 = vunpack.c.l.s4 1934713408
        %v855 = vunpack.c.0.s8 %v854
        %v856 = vperm.slane %v850, %v855
        %v858 = vunpack.c.l.s4 1934713408
        %v859 = vunpack.c.0.s8 %v858
        %v860 = vperm.slane %v852, %v859
        %v861 = vrot.slane %v848, 4
        %v862 = vsel %vm651, %v861, %v842
        %v863 = vrot.slane %v842, 4
        %v864 = vsel %vm651, %v848, %v863
        %v866 = vunpack.c.l.s4 1934713408
        %v867 = vunpack.c.0.s8 %v866
        %v868 = vperm.slane %v862, %v867
        %v870 = vunpack.c.l.s4 1934713408
        %v871 = vunpack.c.0.s8 %v870
        %v872 = vperm.slane %v864, %v871
        %v873 = vrot.slane %v868, 4
        %v874 = vsel %vm651, %v873, %v856
        %v875 = vrot.slane %v856, 4
        %v876 = vsel %vm651, %v868, %v875
        %v877 = vrot.slane %v872, 4
        %v878 = vsel %vm651, %v877, %v860
        %v879 = vrot.slane %v860, 4
        %v880 = vsel %vm651, %v872, %v879
        %882 = vrot.lane.b32.xlu0 %v638, 120
        %v883 = vpop.permute.xlu0 %882
        %885 = vrot.lane.b32.xlu0 %v638, 112
        %v886 = vpop.permute.xlu0 %885
        %888 = vrot.lane.b32.xlu0 %v638, 104
        %v889 = vpop.permute.xlu0 %888
        %v891 = vrot.slane %v886, 4
        %v892 = vsel %vm651, %v891, %v638
        %v893 = vrot.slane %v638, 4
        %v894 = vsel %vm651, %v886, %v893
        %v896 = vunpack.c.l.s4 1983009808
        %v897 = vunpack.c.0.s8 %v896
        %v898 = vperm.slane %v892, %v897
        %v900 = vunpack.c.l.s4 1983009808
        %v901 = vunpack.c.0.s8 %v900
        %v902 = vperm.slane %v894, %v901
        %v903 = vrot.slane %v889, 4
        %v904 = vsel %vm651, %v903, %v883
        %v905 = vrot.slane %v883, 4
        %v906 = vsel %vm651, %v889, %v905
        %v908 = vunpack.c.l.s4 1983009808
        %v909 = vunpack.c.0.s8 %v908
        %v910 = vperm.slane %v904, %v909
        %v912 = vunpack.c.l.s4 1983009808
        %v913 = vunpack.c.0.s8 %v912
        %v914 = vperm.slane %v906, %v913
        %v915 = vrot.slane %v910, 4
        %v916 = vsel %vm651, %v915, %v898
        %v917 = vrot.slane %v898, 4
        %v918 = vsel %vm651, %v910, %v917
        %v920 = vunpack.c.l.s4 1934713408
        %v921 = vunpack.c.0.s8 %v920
        %v922 = vperm.slane %v916, %v921
        %v924 = vunpack.c.l.s4 1934713408
        %v925 = vunpack.c.0.s8 %v924
        %v926 = vperm.slane %v918, %v925
        %v927 = vrot.slane %v914, 4
        %v928 = vsel %vm651, %v927, %v902
        %v929 = vrot.slane %v902, 4
        %v930 = vsel %vm651, %v914, %v929
        %v932 = vunpack.c.l.s4 1934713408
        %v933 = vunpack.c.0.s8 %v932
        %v934 = vperm.slane %v928, %v933
        %v936 = vunpack.c.l.s4 1934713408
        %v937 = vunpack.c.0.s8 %v936
        %v938 = vperm.slane %v930, %v937
        %v939 = vrot.slane %v922, 4
        %v940 = vsel %vm651, 0.0, %v939
        %v941 = vrot.slane %v926, 4
        %v942 = vsel %vm651, 0.0, %v941
        %v943 = vrot.slane %v934, 4
        %v944 = vsel %vm651, 0.0, %v943
        %v945 = vrot.slane %v938, 4
        %v946 = vsel %vm651, 0.0, %v945
        %v947 = vsel %vm651, %v941, %v922
        %v949 = vunpack.c.l.s4 1983009808
        %v950 = vunpack.c.0.s8 %v949
        %v951 = vperm.slane %v947, %v950
        %v952 = vrot.slane %v942, 4
        %v953 = vsel %vm651, %v952, %v940
        %v955 = vunpack.c.l.s4 1983009808
        %v956 = vunpack.c.0.s8 %v955
        %v957 = vperm.slane %v953, %v956
        %v958 = vsel %vm651, %v945, %v934
        %v960 = vunpack.c.l.s4 1983009808
        %v961 = vunpack.c.0.s8 %v960
        %v962 = vperm.slane %v958, %v961
        %v963 = vrot.slane %v946, 4
        %v964 = vsel %vm651, %v963, %v944
        %v966 = vunpack.c.l.s4 1983009808
        %v967 = vunpack.c.0.s8 %v966
        %v968 = vperm.slane %v964, %v967
        %v969 = vrot.slane %v957, 4
        %v970 = vsel %vm651, %v969, %v951
        %v971 = vrot.slane %v951, 4
        %v972 = vsel %vm651, %v957, %v971
        %v974 = vunpack.c.l.s4 1934713408
        %v975 = vunpack.c.0.s8 %v974
        %v976 = vperm.slane %v970, %v975
        %v978 = vunpack.c.l.s4 1934713408
        %v979 = vunpack.c.0.s8 %v978
        %v980 = vperm.slane %v972, %v979
        %v981 = vrot.slane %v968, 4
        %v982 = vsel %vm651, %v981, %v962
        %v983 = vrot.slane %v962, 4
        %v984 = vsel %vm651, %v968, %v983
        %v986 = vunpack.c.l.s4 1934713408
        %v987 = vunpack.c.0.s8 %v986
        %v988 = vperm.slane %v982, %v987
        %v990 = vunpack.c.l.s4 1934713408
        %v991 = vunpack.c.0.s8 %v990
        %v992 = vperm.slane %v984, %v991
        %v993 = vrot.slane %v988, 4
        %v994 = vsel %vm651, %v993, %v976
        %v995 = vrot.slane %v976, 4
        %v996 = vsel %vm651, %v988, %v995
        %v997 = vrot.slane %v992, 4
        %v998 = vsel %vm651, %v997, %v980
        %v999 = vrot.slane %v980, 4
        %v1000 = vsel %vm651, %v992, %v999
        %vm1001 = vcmask 64512
        %v1003 = vsel %vm1001, %v754, 0
        %v1006 = vsel %vm1001, %v874, 0
        %1008 = vmatpush.xpose.msra.mxu0 0.0
        %1009 = vmatpush.xpose.msra.mxu0 0.0
        %1010 = vmatpush.xpose.msra.mxu0 0.0
        %1011 = vmatpush.xpose.msra.mxu0 0.0
        %1012 = vmatpush.xpose.msra.mxu0 0.0
        %1013 = vmatpush.xpose.msra.mxu0 0.0
        %1014 = vmatpush.xpose.msra.mxu0 0.0
        %1015 = vmatpush.xpose.msra.mxu0 0.0
        %1016 = vmatpush.xpose.msra.mxu0 0.0
        %1017 = vmatpush.xpose.msra.mxu0 0.0
        %1018 = vmatpush.xpose.msra.mxu0 0.0
        %1019 = vmatpush.xpose.msra.mxu0 0.0
        %1020 = vmatpush.xpose.msra.mxu0 0.0
        %1021 = vmatpush.xpose.msra.mxu0 0.0
        %1022 = vmatpush.xpose.msra.mxu0 0.0
        %1023 = vmatpush.xpose.msra.mxu0 %v1006
        %1024 = vmatmul.f32.gmra.mxu0 %v1003
        %v1025 = vpop.f32.mrf.mxu0
        %v1026 = vadd.f32 0.0, %v1025
        %1027 = vdwg.mxu0
        %v1029 = vsel %vm1001, %v756, 0
        %v1032 = vsel %vm1001, %v876, 0
        %1034 = vmatpush.xpose.msra.mxu0 0.0
        %1035 = vmatpush.xpose.msra.mxu0 0.0
        %1036 = vmatpush.xpose.msra.mxu0 0.0
        %1037 = vmatpush.xpose.msra.mxu0 0.0
        %1038 = vmatpush.xpose.msra.mxu0 0.0
        %1039 = vmatpush.xpose.msra.mxu0 0.0
        %1040 = vmatpush.xpose.msra.mxu0 0.0
        %1041 = vmatpush.xpose.msra.mxu0 0.0
        %1042 = vmatpush.xpose.msra.mxu0 0.0
        %1043 = vmatpush.xpose.msra.mxu0 0.0
        %1044 = vmatpush.xpose.msra.mxu0 0.0
        %1045 = vmatpush.xpose.msra.mxu0 0.0
        %1046 = vmatpush.xpose.msra.mxu0 0.0
        %1047 = vmatpush.xpose.msra.mxu0 0.0
        %1048 = vmatpush.xpose.msra.mxu0 0.0
        %1049 = vmatpush.xpose.msra.mxu0 %v1032
        %1050 = vmatmul.f32.gmra.mxu0 %v1029
        %v1051 = vpop.f32.mrf.mxu0
        %v1052 = vadd.f32 0.0, %v1051
        %1053 = vdwg.mxu0
        %v1055 = vsel %vm1001, %v758, 0
        %v1058 = vsel %vm1001, %v878, 0
        %1060 = vmatpush.xpose.msra.mxu0 0.0
        %1061 = vmatpush.xpose.msra.mxu0 0.0
        %1062 = vmatpush.xpose.msra.mxu0 0.0
        %1063 = vmatpush.xpose.msra.mxu0 0.0
        %1064 = vmatpush.xpose.msra.mxu0 0.0
        %1065 = vmatpush.xpose.msra.mxu0 0.0
        %1066 = vmatpush.xpose.msra.mxu0 0.0
        %1067 = vmatpush.xpose.msra.mxu0 0.0
        %1068 = vmatpush.xpose.msra.mxu0 0.0
        %1069 = vmatpush.xpose.msra.mxu0 0.0
        %1070 = vmatpush.xpose.msra.mxu0 0.0
        %1071 = vmatpush.xpose.msra.mxu0 0.0
        %1072 = vmatpush.xpose.msra.mxu0 0.0
        %1073 = vmatpush.xpose.msra.mxu0 0.0
        %1074 = vmatpush.xpose.msra.mxu0 0.0
        %1075 = vmatpush.xpose.msra.mxu0 %v1058
        %1076 = vmatmul.f32.gmra.mxu0 %v1055
        %v1077 = vpop.f32.mrf.mxu0
        %v1078 = vadd.f32 0.0, %v1077
        %1079 = vdwg.mxu0
        %v1081 = vsel %vm1001, %v760, 0
        %v1084 = vsel %vm1001, %v880, 0
        %1086 = vmatpush.xpose.msra.mxu0 0.0
        %1087 = vmatpush.xpose.msra.mxu0 0.0
        %1088 = vmatpush.xpose.msra.mxu0 0.0
        %1089 = vmatpush.xpose.msra.mxu0 0.0
        %1090 = vmatpush.xpose.msra.mxu0 0.0
        %1091 = vmatpush.xpose.msra.mxu0 0.0
        %1092 = vmatpush.xpose.msra.mxu0 0.0
        %1093 = vmatpush.xpose.msra.mxu0 0.0
        %1094 = vmatpush.xpose.msra.mxu0 0.0
        %1095 = vmatpush.xpose.msra.mxu0 0.0
        %1096 = vmatpush.xpose.msra.mxu0 0.0
        %1097 = vmatpush.xpose.msra.mxu0 0.0
        %1098 = vmatpush.xpose.msra.mxu0 0.0
        %1099 = vmatpush.xpose.msra.mxu0 0.0
        %1100 = vmatpush.xpose.msra.mxu0 0.0
        %1101 = vmatpush.xpose.msra.mxu0 %v1084
        %1102 = vmatmul.f32.gmra.mxu0 %v1081
        %v1103 = vpop.f32.mrf.mxu0
        %v1104 = vadd.f32 0.0, %v1103
        %1105 = vdwg.mxu0
        %vm1106 = vcmp.gt.f32.partialorder %v557, 0.0
        %v1107 = vsel %vm1106, 1, 0
        %vm1108 = vcmp.eq.s32.totalorder %v1107, 1
        %v1109 = vsel %vm1108, -1e+09, %v1026
        %v1110 = vsel %vm1108, -1e+09, %v1052
        %v1111 = vsel %vm1108, -1e+09, %v1078
        %v1112 = vsel %vm1108, -1e+09, %v1104
        %v1113 = vsel %vm1001, %v1109, -inf
        %1114 = vmax.xlane.f32.xlu0 %v1113
        %v1115 = vpop.xlane.xlu0 %1114
        %v1116 = vsel %vm1001, %v1110, -inf
        %1117 = vmax.xlane.f32.xlu0 %v1116
        %v1118 = vpop.xlane.xlu0 %1117
        %v1119 = vsel %vm1001, %v1111, -inf
        %1120 = vmax.xlane.f32.xlu0 %v1119
        %v1121 = vpop.xlane.xlu0 %1120
        %v1122 = vsel %vm1001, %v1112, -inf
        %1123 = vmax.xlane.f32.xlu0 %v1122
        %v1124 = vpop.xlane.xlu0 %1123
        %v1125 = vsub.f32 %v1109, %v1115
        %v1126 = vsub.f32 %v1110, %v1118
        %v1127 = vsub.f32 %v1111, %v1121
        %v1128 = vsub.f32 %v1112, %v1124
        %v1129 = vmul.f32 %v1125, 1.442695
        %v1130 = vpow.pop %v1129
        %v1131 = vmul.f32 %v1126, 1.442695
        %v1132 = vpow.pop %v1131
        %v1133 = vmul.f32 %v1127, 1.442695
        %v1134 = vpow.pop %v1133
        %v1135 = vmul.f32 %v1128, 1.442695
        %v1136 = vpow.pop %v1135
        %v1137 = vsel %vm1001, %v1130, 0.0
        %1138 = vadd.xlane.f32.xlu0 %v1137
        %v1139 = vpop.xlane.xlu0 %1138
        %v1140 = vsel %vm1001, %v1132, 0.0
        %1141 = vadd.xlane.f32.xlu0 %v1140
        %v1142 = vpop.xlane.xlu0 %1141
        %v1143 = vsel %vm1001, %v1134, 0.0
        %1144 = vadd.xlane.f32.xlu0 %v1143
        %v1145 = vpop.xlane.xlu0 %1144
        %v1146 = vsel %vm1001, %v1136, 0.0
        %1147 = vadd.xlane.f32.xlu0 %v1146
        %v1148 = vpop.xlane.xlu0 %1147
        %v1149 = vrcp.pop %v1139
        %v1150 = vrcp.pop %v1142
        %v1151 = vrcp.pop %v1145
        %v1152 = vrcp.pop %v1148
        %v1153 = vmul.f32 %v1130, %v1149
        %v1154 = vmul.f32 %v1132, %v1150
        %v1155 = vmul.f32 %v1134, %v1151
        %v1156 = vmul.f32 %v1136, %v1152
        %v1158 = vsel %vm1001, %v1153, 0
        %1160 = vmatpush.msra.mxu0 0.0
        %1161 = vmatpush.msra.mxu0 0.0
        %1162 = vmatpush.msra.mxu0 0.0
        %1163 = vmatpush.msra.mxu0 0.0
        %1164 = vmatpush.msra.mxu0 0.0
        %1165 = vmatpush.msra.mxu0 0.0
        %1166 = vmatpush.msra.mxu0 0.0
        %1167 = vmatpush.msra.mxu0 0.0
        %1168 = vmatpush.msra.mxu0 0.0
        %1169 = vmatpush.msra.mxu0 0.0
        %1170 = vmatpush.msra.mxu0 0.0
        %1171 = vmatpush.msra.mxu0 0.0
        %1172 = vmatpush.msra.mxu0 0.0
        %1173 = vmatpush.msra.mxu0 0.0
        %1174 = vmatpush.msra.mxu0 0.0
        %1175 = vmatpush.msra.mxu0 %v994
        %1176 = vmatmul.f32.gmra.mxu0 %v1158
        %v1177 = vpop.f32.mrf.mxu0
        %v1178 = vadd.f32 0.0, %v1177
        %1179 = vdwg.mxu0
        %v1181 = vsel %vm1001, %v1154, 0
        %1183 = vmatpush.msra.mxu0 0.0
        %1184 = vmatpush.msra.mxu0 0.0
        %1185 = vmatpush.msra.mxu0 0.0
        %1186 = vmatpush.msra.mxu0 0.0
        %1187 = vmatpush.msra.mxu0 0.0
        %1188 = vmatpush.msra.mxu0 0.0
        %1189 = vmatpush.msra.mxu0 0.0
        %1190 = vmatpush.msra.mxu0 0.0
        %1191 = vmatpush.msra.mxu0 0.0
        %1192 = vmatpush.msra.mxu0 0.0
        %1193 = vmatpush.msra.mxu0 0.0
        %1194 = vmatpush.msra.mxu0 0.0
        %1195 = vmatpush.msra.mxu0 0.0
        %1196 = vmatpush.msra.mxu0 0.0
        %1197 = vmatpush.msra.mxu0 0.0
        %1198 = vmatpush.msra.mxu0 %v996
        %1199 = vmatmul.f32.gmra.mxu0 %v1181
        %v1200 = vpop.f32.mrf.mxu0
        %v1201 = vadd.f32 0.0, %v1200
        %1202 = vdwg.mxu0
        %v1204 = vsel %vm1001, %v1155, 0
        %1206 = vmatpush.msra.mxu0 0.0
        %1207 = vmatpush.msra.mxu0 0.0
        %1208 = vmatpush.msra.mxu0 0.0
        %1209 = vmatpush.msra.mxu0 0.0
        %1210 = vmatpush.msra.mxu0 0.0
        %1211 = vmatpush.msra.mxu0 0.0
        %1212 = vmatpush.msra.mxu0 0.0
        %1213 = vmatpush.msra.mxu0 0.0
        %1214 = vmatpush.msra.mxu0 0.0
        %1215 = vmatpush.msra.mxu0 0.0
        %1216 = vmatpush.msra.mxu0 0.0
        %1217 = vmatpush.msra.mxu0 0.0
        %1218 = vmatpush.msra.mxu0 0.0
        %1219 = vmatpush.msra.mxu0 0.0
        %1220 = vmatpush.msra.mxu0 0.0
        %1221 = vmatpush.msra.mxu0 %v998
        %1222 = vmatmul.f32.gmra.mxu0 %v1204
        %v1223 = vpop.f32.mrf.mxu0
        %v1224 = vadd.f32 0.0, %v1223
        %1225 = vdwg.mxu0
        %v1227 = vsel %vm1001, %v1156, 0
        %1229 = vmatpush.msra.mxu0 0.0
        %1230 = vmatpush.msra.mxu0 0.0
        %1231 = vmatpush.msra.mxu0 0.0
        %1232 = vmatpush.msra.mxu0 0.0
        %1233 = vmatpush.msra.mxu0 0.0
        %1234 = vmatpush.msra.mxu0 0.0
        %1235 = vmatpush.msra.mxu0 0.0
        %1236 = vmatpush.msra.mxu0 0.0
        %1237 = vmatpush.msra.mxu0 0.0
        %1238 = vmatpush.msra.mxu0 0.0
        %1239 = vmatpush.msra.mxu0 0.0
        %1240 = vmatpush.msra.mxu0 0.0
        %1241 = vmatpush.msra.mxu0 0.0
        %1242 = vmatpush.msra.mxu0 0.0
        %1243 = vmatpush.msra.mxu0 0.0
        %1244 = vmatpush.msra.mxu0 %v1000
        %1245 = vmatmul.f32.gmra.mxu0 %v1227
        %v1246 = vpop.f32.mrf.mxu0
        %v1247 = vadd.f32 0.0, %v1246
        %1248 = vdwg.mxu0
        %v1249 = vrot.slane %v1224, 4
        %v1250 = vsel %vm651, %v1249, %v1178
        %v1251 = vrot.slane %v1178, 4
        %v1252 = vsel %vm651, %v1224, %v1251
        %v1254 = vunpack.c.l.s4 1983009808
        %v1255 = vunpack.c.0.s8 %v1254
        %v1256 = vperm.slane %v1250, %v1255
        %v1258 = vunpack.c.l.s4 1983009808
        %v1259 = vunpack.c.0.s8 %v1258
        %v1260 = vperm.slane %v1252, %v1259
        %v1261 = vrot.slane %v1247, 4
        %v1262 = vsel %vm651, %v1261, %v1201
        %v1263 = vrot.slane %v1201, 4
        %v1264 = vsel %vm651, %v1247, %v1263
        %v1266 = vunpack.c.l.s4 1983009808
        %v1267 = vunpack.c.0.s8 %v1266
        %v1268 = vperm.slane %v1262, %v1267
        %v1270 = vunpack.c.l.s4 1983009808
        %v1271 = vunpack.c.0.s8 %v1270
        %v1272 = vperm.slane %v1264, %v1271
        %v1273 = vrot.slane %v1268, 4
        %v1274 = vsel %vm651, %v1273, %v1256
        %v1275 = vrot.slane %v1256, 4
        %v1276 = vsel %vm651, %v1268, %v1275
        %v1278 = vunpack.c.l.s4 1934713408
        %v1279 = vunpack.c.0.s8 %v1278
        %v1280 = vperm.slane %v1274, %v1279
        %v1282 = vunpack.c.l.s4 1934713408
        %v1283 = vunpack.c.0.s8 %v1282
        %v1284 = vperm.slane %v1276, %v1283
        %v1285 = vrot.slane %v1272, 4
        %v1286 = vsel %vm651, %v1285, %v1260
        %v1287 = vrot.slane %v1260, 4
        %v1288 = vsel %vm651, %v1272, %v1287
        %v1290 = vunpack.c.l.s4 1934713408
        %v1291 = vunpack.c.0.s8 %v1290
        %v1292 = vperm.slane %v1286, %v1291
        %v1294 = vunpack.c.l.s4 1934713408
        %v1295 = vunpack.c.0.s8 %v1294
        %v1296 = vperm.slane %v1288, %v1295
        %v1297 = vrot.slane %v1280, 4
        %v1298 = vsel %vm651, 0.0, %v1297
        %v1299 = vrot.slane %v1284, 4
        %v1300 = vsel %vm651, 0.0, %v1299
        %v1301 = vrot.slane %v1292, 4
        %v1302 = vsel %vm651, 0.0, %v1301
        %v1303 = vrot.slane %v1296, 4
        %v1304 = vsel %vm651, 0.0, %v1303
        %v1305 = vsel %vm651, %v1299, %v1280
        %v1307 = vunpack.c.l.s4 1983009808
        %v1308 = vunpack.c.0.s8 %v1307
        %v1309 = vperm.slane %v1305, %v1308
        %v1310 = vrot.slane %v1300, 4
        %v1311 = vsel %vm651, %v1310, %v1298
        %v1313 = vunpack.c.l.s4 1983009808
        %v1314 = vunpack.c.0.s8 %v1313
        %v1315 = vperm.slane %v1311, %v1314
        %v1316 = vsel %vm651, %v1303, %v1292
        %v1318 = vunpack.c.l.s4 1983009808
        %v1319 = vunpack.c.0.s8 %v1318
        %v1320 = vperm.slane %v1316, %v1319
        %v1321 = vrot.slane %v1304, 4
        %v1322 = vsel %vm651, %v1321, %v1302
        %v1324 = vunpack.c.l.s4 1983009808
        %v1325 = vunpack.c.0.s8 %v1324
        %v1326 = vperm.slane %v1322, %v1325
        %v1327 = vrot.slane %v1315, 4
        %v1328 = vsel %vm651, %v1327, %v1309
        %v1329 = vrot.slane %v1309, 4
        %v1330 = vsel %vm651, %v1315, %v1329
        %v1332 = vunpack.c.l.s4 1934713408
        %v1333 = vunpack.c.0.s8 %v1332
        %v1334 = vperm.slane %v1328, %v1333
        %v1336 = vunpack.c.l.s4 1934713408
        %v1337 = vunpack.c.0.s8 %v1336
        %v1338 = vperm.slane %v1330, %v1337
        %v1339 = vrot.slane %v1326, 4
        %v1340 = vsel %vm651, %v1339, %v1320
        %v1341 = vrot.slane %v1320, 4
        %v1342 = vsel %vm651, %v1326, %v1341
        %v1344 = vunpack.c.l.s4 1934713408
        %v1345 = vunpack.c.0.s8 %v1344
        %v1346 = vperm.slane %v1340, %v1345
        %v1348 = vunpack.c.l.s4 1934713408
        %v1349 = vunpack.c.0.s8 %v1348
        %v1350 = vperm.slane %v1342, %v1349
        %v1351 = vrot.slane %v1346, 4
        %v1352 = vsel %vm651, %v1351, %v1334
        %v1353 = vrot.slane %v1334, 4
        %v1354 = vsel %vm651, %v1346, %v1353
        %v1355 = vrot.slane %v1350, 4
        %v1356 = vsel %vm651, %v1355, %v1338
        %v1357 = vrot.slane %v1338, 4
        %v1358 = vsel %vm651, %v1350, %v1357
        %1360 = vrot.lane.b32.xlu0 %v1354, 8
        %v1361 = vpop.permute.xlu0 %1360
        %1364 = vrot.lane.b32.xlu0 %v1356, 16
        %v1365 = vpop.permute.xlu0 %1364
        %1368 = vrot.lane.b32.xlu0 %v1358, 24
        %v1369 = vpop.permute.xlu0 %1368
        %v1371 = vsel %vm1001, %v1352, %v1361
        %vm1372 = vcmask 130048
        %v1373 = vsel %vm1372, %v1371, %v1365
        %vm1374 = vcmask 195584
        %v1375 = vsel %vm1374, %v1373, %v1369
        %v1376 = vld [vmem:[#allocation11] sm:$0xff]
        %v1377 = vld [vmem:[#allocation11 + $0x8] sm:$0xff]
        %v1378 = vld [vmem:[#allocation11 + $0x10] sm:$0xff]
        %v1379 = vld [vmem:[#allocation11 + $0x18] sm:$0xff]
        %v1381 = vsel %vm562, %v1375, 0
        %1383 = vmatpush.msra.mxu0 0.0
        %1384 = vmatpush.msra.mxu0 0.0
        %1385 = vmatpush.msra.mxu0 0.0
        %1386 = vmatpush.msra.mxu0 0.0
        %1387 = vmatpush.msra.mxu0 0.0
        %1388 = vmatpush.msra.mxu0 0.0
        %1389 = vmatpush.msra.mxu0 0.0
        %1390 = vmatpush.msra.mxu0 0.0
        %1391 = vmatpush.msra.mxu0 0.0
        %1392 = vmatpush.msra.mxu0 0.0
        %1393 = vmatpush.msra.mxu0 0.0
        %1394 = vmatpush.msra.mxu0 0.0
        %1395 = vmatpush.msra.mxu0 %v1379
        %1396 = vmatpush.msra.mxu0 %v1378
        %1397 = vmatpush.msra.mxu0 %v1377
        %1398 = vmatpush.msra.mxu0 %v1376
        %1399 = vmatmul.f32.gmra.mxu0 %v1381
        %v1400 = vpop.f32.mrf.mxu0
        %v1401 = vadd.f32 %v554, %v1400
        %1402 = vdwg.mxu0
        %v1403 = vsel %vm562, %v1401, 0.0
        %1404 = vadd.xlane.f32.xlu0 %v1403
        %v1405 = vpop.xlane.xlu0 %1404
        %v1406 = vrcp.pop 32.0
        %v1407 = vmul.f32 32.0, %v1406
        %v1408 = vsub.f32 1.0, %v1407
        %v1409 = vmul.f32 %v1406, %v1408
        %v1410 = vadd.f32 %v1406, %v1409
        %vm1411 = vweird.f32 %v1406
        %v1412 = vsel %vm1411, %v1406, %v1410
        %v1413 = vmul.f32 %v1405, %v1412
        %v1414 = vsub.f32 %v1401, %v1413
        %v1415 = vmul.f32 %v1414, %v1414
        %v1416 = vsel %vm562, %v1415, 0.0
        %1417 = vadd.xlane.f32.xlu0 %v1416
        %v1418 = vpop.xlane.xlu0 %1417
        %v1419 = vmul.f32 %v1418, %v1412
        %v1420 = vadd.f32 %v1419, 1e-05
        %v1421 = vrsqrt.pop %v1420
        %v1422 = vmul.f32 %v1421, %v1420
        %v1423 = vmul.f32 %v1422, %v1421
        %v1424 = vmul.f32 0.5, %v1423
        %v1425 = vsub.f32 1.5, %v1424
        %v1426 = vmul.f32 %v1421, %v1425
        %vm1427 = vweird.f32 %v1420
        %vm1428 = vweird.f32 %v1421
        %vm1429 = vmor %vm1427, %vm1428
        %v1430 = vsel %vm1429, %v1421, %v1426
        %v1431 = vmul.f32 %v1414, %v1430
        %v1432 = vld [vmem:[%s8] sm:$0x1]
        %v1434 = vperm.slane %v1432, 0
        %v1436 = vmul.f32 %v1431, %v1434
        %v1437 = vld [vmem:[%s9] sm:$0x1]
        %v1439 = vperm.slane %v1437, 0
        %v1441 = vadd.f32 %v1436, %v1439
        %1442 = vst.msk [vmem:[%s535] sm:$0xff] %vm562, %v1441
        %v1443 = vrot.slane %v1155, 4
        %v1444 = vsel %vm651, %v1443, %v1153
        %v1445 = vrot.slane %v1153, 4
        %v1446 = vsel %vm651, %v1155, %v1445
        %v1448 = vunpack.c.l.s4 1983009808
        %v1449 = vunpack.c.0.s8 %v1448
        %v1450 = vperm.slane %v1444, %v1449
        %v1452 = vunpack.c.l.s4 1983009808
        %v1453 = vunpack.c.0.s8 %v1452
        %v1454 = vperm.slane %v1446, %v1453
        %v1455 = vrot.slane %v1156, 4
        %v1456 = vsel %vm651, %v1455, %v1154
        %v1457 = vrot.slane %v1154, 4
        %v1458 = vsel %vm651, %v1156, %v1457
        %v1460 = vunpack.c.l.s4 1983009808
        %v1461 = vunpack.c.0.s8 %v1460
        %v1462 = vperm.slane %v1456, %v1461
        %v1464 = vunpack.c.l.s4 1983009808
        %v1465 = vunpack.c.0.s8 %v1464
        %v1466 = vperm.slane %v1458, %v1465
        %v1467 = vrot.slane %v1462, 4
        %v1468 = vsel %vm651, %v1467, %v1450
        %v1469 = vrot.slane %v1450, 4
        %v1470 = vsel %vm651, %v1462, %v1469
        %v1472 = vunpack.c.l.s4 1934713408
        %v1473 = vunpack.c.0.s8 %v1472
        %v1474 = vperm.slane %v1468, %v1473
        %v1476 = vunpack.c.l.s4 1934713408
        %v1477 = vunpack.c.0.s8 %v1476
        %v1478 = vperm.slane %v1470, %v1477
        %v1479 = vrot.slane %v1466, 4
        %v1480 = vsel %vm651, %v1479, %v1454
        %v1481 = vrot.slane %v1454, 4
        %v1482 = vsel %vm651, %v1466, %v1481
        %v1484 = vunpack.c.l.s4 1934713408
        %v1485 = vunpack.c.0.s8 %v1484
        %v1486 = vperm.slane %v1480, %v1485
        %v1488 = vunpack.c.l.s4 1934713408
        %v1489 = vunpack.c.0.s8 %v1488
        %v1490 = vperm.slane %v1482, %v1489
        %v1491 = vrot.slane %v1474, 4
        %v1492 = vsel %vm651, 0.0, %v1491
        %v1493 = vrot.slane %v1478, 4
        %v1494 = vsel %vm651, 0.0, %v1493
        %v1495 = vrot.slane %v1486, 4
        %v1496 = vsel %vm651, 0.0, %v1495
        %v1497 = vrot.slane %v1490, 4
        %v1498 = vsel %vm651, 0.0, %v1497
        %v1499 = vsel %vm651, %v1493, %v1474
        %v1501 = vunpack.c.l.s4 1983009808
        %v1502 = vunpack.c.0.s8 %v1501
        %v1503 = vperm.slane %v1499, %v1502
        %v1504 = vrot.slane %v1494, 4
        %v1505 = vsel %vm651, %v1504, %v1492
        %v1507 = vunpack.c.l.s4 1983009808
        %v1508 = vunpack.c.0.s8 %v1507
        %v1509 = vperm.slane %v1505, %v1508
        %v1510 = vsel %vm651, %v1497, %v1486
        %v1512 = vunpack.c.l.s4 1983009808
        %v1513 = vunpack.c.0.s8 %v1512
        %v1514 = vperm.slane %v1510, %v1513
        %v1515 = vrot.slane %v1498, 4
        %v1516 = vsel %vm651, %v1515, %v1496
        %v1518 = vunpack.c.l.s4 1983009808
        %v1519 = vunpack.c.0.s8 %v1518
        %v1520 = vperm.slane %v1516, %v1519
        %v1521 = vrot.slane %v1509, 4
        %v1522 = vsel %vm651, %v1521, %v1503
        %v1523 = vrot.slane %v1503, 4
        %v1524 = vsel %vm651, %v1509, %v1523
        %v1526 = vunpack.c.l.s4 1934713408
        %v1527 = vunpack.c.0.s8 %v1526
        %v1528 = vperm.slane %v1522, %v1527
        %v1530 = vunpack.c.l.s4 1934713408
        %v1531 = vunpack.c.0.s8 %v1530
        %v1532 = vperm.slane %v1524, %v1531
        %v1533 = vrot.slane %v1520, 4
        %v1534 = vsel %vm651, %v1533, %v1514
        %v1535 = vrot.slane %v1514, 4
        %v1536 = vsel %vm651, %v1520, %v1535
        %v1538 = vunpack.c.l.s4 1934713408
        %v1539 = vunpack.c.0.s8 %v1538
        %v1540 = vperm.slane %v1534, %v1539
        %v1542 = vunpack.c.l.s4 1934713408
        %v1543 = vunpack.c.0.s8 %v1542
        %v1544 = vperm.slane %v1536, %v1543
        %v1545 = vrot.slane %v1540, 4
        %v1546 = vsel %vm651, %v1545, %v1528
        %v1547 = vrot.slane %v1528, 4
        %v1548 = vsel %vm651, %v1540, %v1547
        %v1549 = vrot.slane %v1544, 4
        %v1550 = vsel %vm651, %v1549, %v1532
        %v1551 = vrot.slane %v1532, 4
        %v1552 = vsel %vm651, %v1544, %v1551
        %1554 = vrot.lane.b32.xlu0 %v1548, 8
        %v1555 = vpop.permute.xlu0 %1554
        %1558 = vrot.lane.b32.xlu0 %v1550, 16
        %v1559 = vpop.permute.xlu0 %1558
        %1562 = vrot.lane.b32.xlu0 %v1552, 24
        %v1563 = vpop.permute.xlu0 %1562
        %v1565 = vsel %vm1001, %v1546, %v1555
        %v1566 = vsel %vm1372, %v1565, %v1559
        %v1567 = vsel %vm1374, %v1566, %v1563
        %1568 = vst.msk [vmem:[%s553] sm:$0xff] %vm562, %v1567
        %s1569 = sand.u32 %s272, 1
        %s1570 = scalar_lea.sflag [#allocation4], %s1569
        %s1571 = sand.u32 %s272, 1
        %s1572 = smul.addr %s1571, 8
        %s1573 = scalar_lea.vmem [#allocation13], %s1572
        %p1574 = scmp.lt.s32.totalorder %s34, 1
        %s1575 = scalar_select %p1574, %s34, 1
        %s1576 = smul.addr %s1575, 8
        %s1577 = scalar_lea.vmem %s11, %s1576
        // Predicated region
        $region85: #{multi_head_attention.1} parent=59 // pred_check
          %p1578 = pneg %p282
        $region86: #{multi_head_attention.1} parent=59 // pred_check_branch
          %1580 = sbr.rel (%p1578) target = $region88
        $region87: #{multi_head_attention.1} parent=59 // pred_region
          %1582 = vsyncadd %s1570, 0
          %s1583 = smul.addr %s34, 8
          %s1584 = scalar_lea.hbm %s10, %s1583
          %s1586 = sshll.u32 %s1573, 4
          %s1587 = int_to_ptr.vmem [resolvable:$true] %s1586
          %s1588 = sshll.u32 %s1584, 4
          %s1589 = int_to_ptr.hbm [resolvable:$true] %s1588
          %1591 = dma.vmem_to_hbm [thread:$0]  %s1587, 128, %s1589, %s1570
        $region88: #{multi_head_attention.1} parent=59 // pred_fallthru
          _
        // Predicated region
        $region89: #{multi_head_attention.1} parent=59 // pred_check
          %p1592 = pneg %p308
        $region90: #{multi_head_attention.1} parent=59 // pred_check_branch
          %1594 = sbr.rel (%p1592) target = $region92
        $region91: #{multi_head_attention.1} parent=59 // pred_region
          _
        $region92: #{multi_head_attention.1} parent=59 // pred_fallthru
          _
      $region60: #{multi_head_attention.1} parent=5 // pred_fallthru
        _
      %p1595 = scmp.le.s32.totalorder 2, %s29
      // Predicated region
      $region93: #{multi_head_attention.1} parent=5 // pred_check
        %p1596 = pneg %p1595
      $region94: #{multi_head_attention.1} parent=5 // pred_check_branch
        %1598 = sbr.rel (%p1596) target = $region96
      $region95: #{multi_head_attention.1} parent=5 // pred_region
        %s1599 = ssub.s32 %s29, 2
        // Predicated region
        $region97: #{multi_head_attention.1} parent=95 // pred_check
          %p1600 = pneg %p288
        $region98: #{multi_head_attention.1} parent=95 // pred_check_branch
          %1602 = sbr.rel (%p1600) target = $region100
        $region99: #{multi_head_attention.1} parent=95 // pred_region
          %s1603 = sand.u32 %s273, 1
          %s1604 = scalar_lea.sflag [#allocation4], %s1603
          %s1605 = sand.u32 %s273, 1
          %s1606 = smul.addr %s1605, 8
          %s1607 = scalar_lea.vmem [#allocation13], %s1606
          %1609 = dma.done %s1604, 128
        $region100: #{multi_head_attention.1} parent=95 // pred_fallthru
          _
        // Predicated region
        $region101: #{multi_head_attention.1} parent=95 // pred_check
          %p1610 = pneg %p314
        $region102: #{multi_head_attention.1} parent=95 // pred_check_branch
          %1612 = sbr.rel (%p1610) target = $region104
        $region103: #{multi_head_attention.1} parent=95 // pred_region
          %p1613 = scmp.lt.s32.totalorder %s35, 1
          %s1614 = scalar_select %p1613, %s35, 1
          %s1615 = smul.addr %s1614, 8
          %s1616 = scalar_lea.vmem %s11, %s1615
        $region104: #{multi_head_attention.1} parent=95 // pred_fallthru
          _
      $region96: #{multi_head_attention.1} parent=5 // pred_fallthru
        _
    $region6: #{multi_head_attention.1} parent=1 // loop_footer
      %s33 = sadd.s32 1, %s29
    $region7: #{multi_head_attention.1} parent=1 // loop_footer_branch
      %28 = sbr.rel target = $region3
    $region8: #{multi_head_attention.1} parent=1 // loop_exit
      _
    %1617 = vsyncpa [#allocation3], 1
    %s1618 = scalar_lea.sflag [#allocation3], 1
    %1619 = vsyncpa %s1618, 1
    %1620 = vsyncpa [#allocation6], 1
    %s1621 = scalar_lea.sflag [#allocation6], 1
    %1622 = vsyncpa %s1621, 1
    %1623 = vsyncpa [#allocation9], 1
    %1624 = vsyncpa [#allocation12], 1
    %1625 = vsyncpa [#allocation4], 1
    %s1626 = scalar_lea.sflag [#allocation4], 1
    %1627 = vsyncpa %s1626, 1

</llo_original>
